<compile_context>
chip_gen: v7x
topology: tpu7x:2x2x1
jax: 0.10.0
libtpu: 0.0.40
codegen_flags: <defaults>
</compile_context>

<pallas_src>
import functools

import jax
import jax.numpy as jnp
from jax import lax
from jax.experimental import pallas as pl
from jax.experimental.pallas import tpu as pltpu


def _round_up(x: int, m: int) -> int:
    return (x + m - 1) // m * m


def _vmem_limit_bytes() -> int:
    """Generation-aware scoped-VMEM limit (3/4 of physical, capped at 100 MiB)."""
    cap = None
    try:
        info = pltpu.get_tpu_info()
        for name in ("vmem_capacity_bytes", "vmem_bytes", "vmem_size_bytes"):
            cap = getattr(info, name, None)
            if cap:
                break
    except Exception:
        cap = None
    if not cap:
        cap = 64 * 1024 * 1024          # conservative: v7x per-TC VMEM
    return int(min(int(cap) * 3 // 4, 100 * 1024 * 1024))


def _pick_tiles(n_pad, d_pad, elem_bytes, vmem_limit, block_rows, block_cols):
    """Row tile for arithmetic intensity; column tile grown toward resident-K."""
    budget = int(vmem_limit * 0.7)      # headroom for compiler scratch / sems

    def working_set(tm, tn):
        q = 2 * tm * d_pad * elem_bytes            # double-buffered anchor tiles
        k = 2 * tn * d_pad * elem_bytes            # double-buffered contrast tiles
        small = 2 * (tm * 4 + tm * 4 + tn * 4)     # labels / counts blocks
        scratch = 3 * tm * 4                       # m / l / sml accumulators
        logits = 3 * tm * tn * 4                   # f32 logits + mask temporaries
        out = 2 * tm * 4
        return q + k + small + scratch + logits + out

    tm = 16
    while tm * 2 <= min(block_rows, n_pad) and n_pad % (tm * 2) == 0:
        tm *= 2
    tn = 128
    while (tn * 2 <= min(block_cols, n_pad) and n_pad % (tn * 2) == 0
           and working_set(tm, tn * 2) <= budget):
        tn *= 2
    while tm > 16 and working_set(tm, tn) > budget:
        tm //= 2
    return tm, tn


def _supcon_kernel(q_ref, k_ref, lab_r_ref, lab_c_ref, cnt_ref, out_ref,
                   m_sc, l_sc, sml_sc, *, inv_temp, n_real):
    """One (row_tile x col_tile) block of the SupCon loss.

    Grid = (num_row_tiles, num_col_tiles); the column axis is a flash-style
    online reduction with per-row scratch:
      m_sc   running max of logits           (numerical stability)
      l_sc   running sum of exp(logit - m)   (softmax denom, self/pad excluded)
      sml_sc running sum over positives of the raw logit
    Final per-anchor loss uses
      sum(mask*log_prob) = sum(mask*logit) - count(mask) * logsumexp(row).
    """
    qi = pl.program_id(0)
    kj = pl.program_id(1)
    tm = q_ref.shape[0]
    tn = k_ref.shape[0]

    @pl.when(kj == 0)
    def _init():
        m_sc[...] = jnp.full_like(m_sc, -1e30)
        l_sc[...] = jnp.zeros_like(l_sc)
        sml_sc[...] = jnp.zeros_like(sml_sc)

    # bf16 operands -> MXU, f32 accumulation; contract last dims (no transpose).
    logits = lax.dot_general(
        q_ref[...], k_ref[...],
        dimension_numbers=(((1,), (1,)), ((), ())),
        preferred_element_type=jnp.float32)          # [tm, tn] f32
    # Temperature applied to the f32 logits (avoids bf16 rounding of the scale).
    logits = logits * jnp.float32(inv_temp)

    # Class-equality mask rebuilt from the tiled labels (no [N, N] input).
    pos = lab_r_ref[...] == lab_c_ref[...]           # (tm,1)==(1,tn) -> (tm,tn)

    def _accumulate(lg_denom, pos_mask):
        # Positive-pair accumulation over the RAW logits (finite everywhere).
        sml_sc[...] += jnp.sum(jnp.where(pos_mask, logits, 0.0),
                               axis=1, keepdims=True)
        # Online log-sum-exp over the contrast columns.
        m_prev = m_sc[...]
        m_new = jnp.maximum(m_prev, jnp.max(lg_denom, axis=1, keepdims=True))
        alpha = jnp.exp(m_prev - m_new)
        p_sum = jnp.sum(jnp.exp(lg_denom - m_new), axis=1, keepdims=True)
        l_sc[...] = alpha * l_sc[...] + p_sum
        m_sc[...] = m_new

    # Only tiles that touch the diagonal or the padded columns pay for masking.
    row0 = qi * tm
    col0 = kj * tn
    has_diag = jnp.logical_and(row0 < col0 + tn, col0 < row0 + tm)
    has_pad = (col0 + tn) > n_real
    needs_mask = jnp.logical_or(has_diag, has_pad)

    @pl.when(needs_mask)
    def _edge_tile():
        r_glob = row0 + lax.broadcasted_iota(jnp.int32, (tm, 1), 0)
        c_glob = col0 + lax.broadcasted_iota(jnp.int32, (1, tn), 1)
        valid = jnp.logical_and(r_glob != c_glob, c_glob < n_real)
        _accumulate(jnp.where(valid, logits, -1e30),
                    jnp.logical_and(pos, valid))

    @pl.when(jnp.logical_not(needs_mask))
    def _interior_tile():
        _accumulate(logits, pos)

    @pl.when(kj == pl.num_programs(1) - 1)
    def _finalize():
        cnt = cnt_ref[...]                                   # raw positive count
        lse = m_sc[...] + jnp.log(jnp.maximum(l_sc[...], 1e-30))
        mpp = jnp.where(cnt < 1e-6, jnp.float32(1.0), cnt)   # mask_pos_pairs clamp
        inv = pl.reciprocal(mpp, approx=True)                # EUP seed
        inv = inv * (2.0 - mpp * inv)                        # one Newton step
        out_ref[...] = -(sml_sc[...] - cnt * lse) * inv      # per-anchor loss


def supcon_loss(features, labels, temperature=0.07, *,
                block_rows=256, block_cols=4096):
    """SupCon loss, contrast_mode='all'. features: [bsz, n_views, d]; labels: [bsz]."""
    bsz, n_views, d = features.shape
    n = bsz * n_views

    d_pad = _round_up(d, 128)
    n_pad = _round_up(n, 128)

    vmem_limit = _vmem_limit_bytes()
    tm, tn = _pick_tiles(n_pad, d_pad, 2, vmem_limit, block_rows, block_cols)

    # contrast_feature == torch.cat(torch.unbind(features, dim=1), dim=0)
    contrast = jnp.transpose(features, (1, 0, 2)).reshape(n, d)
    feat = jnp.zeros((n_pad, d_pad), dtype=jnp.bfloat16)
    feat = feat.at[:n, :d].set(contrast.astype(jnp.bfloat16))

    # Zero-padded labels (padding handled by the in-kernel validity mask).
    labels_flat = jnp.tile(labels.reshape(-1).astype(jnp.int32), (n_views,))
    lab = jnp.zeros((n_pad,), jnp.int32).at[:n].set(labels_flat)
    lab_row = lab.reshape(n_pad, 1)
    lab_col = lab.reshape(1, n_pad)

    # Per-anchor positive-pair count (excluding self), hoisted out of the kernel:
    # n_views * (#batch samples with same label) - 1.  O(bsz^2) scalar work.
    lab_b = labels.reshape(-1).astype(jnp.int32)
    batch_counts = jnp.sum(lab_b[None, :] == lab_b[:, None], axis=1)
    cnt = (n_views * batch_counts - 1).astype(jnp.float32)
    cnt = jnp.tile(cnt, (n_views,))
    cnt = jnp.zeros((n_pad,), jnp.float32).at[:n].set(cnt).reshape(n_pad, 1)

    grid = (n_pad // tm, n_pad // tn)
    kernel = functools.partial(_supcon_kernel,
                               inv_temp=1.0 / float(temperature), n_real=n)

    per_row = pl.pallas_call(
        kernel,
        out_shape=jax.ShapeDtypeStruct((n_pad, 1), jnp.float32),
        grid_spec=pltpu.PrefetchScalarGridSpec(
            num_scalar_prefetch=0,
            grid=grid,
            in_specs=[
                pl.BlockSpec((tm, d_pad), lambda i, j: (i, 0)),  # anchor rows (bf16)
                pl.BlockSpec((tn, d_pad), lambda i, j: (j, 0)),  # contrast rows (bf16)
                pl.BlockSpec((tm, 1), lambda i, j: (i, 0)),      # row labels
                pl.BlockSpec((1, tn), lambda i, j: (0, j)),      # col labels
                pl.BlockSpec((tm, 1), lambda i, j: (i, 0)),      # positive-pair counts
            ],
            out_specs=pl.BlockSpec((tm, 1), lambda i, j: (i, 0)),
            scratch_shapes=[pltpu.VMEM((tm, 1), jnp.float32)] * 3,
        ),
        compiler_params=pltpu.CompilerParams(
            dimension_semantics=("parallel", "arbitrary"),
            vmem_limit_bytes=vmem_limit,
        ),
    )(feat, feat, lab_row, lab_col, cnt)

    # loss.view(anchor_count, batch_size).mean() == mean over all N real anchors.
    return jnp.sum(per_row[:n, 0]) / n


def supcon_loss_ref(features, labels, temperature=0.07):
    """Pure-JAX reference mirroring the PyTorch forward (contrast_mode='all').

    Features are quantized to bf16 (and back) to match the kernel's bf16 MXU
    operands, so the comparison isolates kernel correctness from the
    (intentional) bf16 input rounding.
    """
    bsz, n_views, d = features.shape
    n = bsz * n_views
    contrast = jnp.transpose(features, (1, 0, 2)).reshape(n, d)
    contrast = contrast.astype(jnp.bfloat16).astype(jnp.float32)
    labels_tiled = jnp.tile(labels.reshape(-1), (n_views,))
    mask = (labels_tiled[:, None] == labels_tiled[None, :]).astype(jnp.float32)

    logits = (contrast @ contrast.T) * (1.0 / temperature)
    logits = logits - jnp.max(logits, axis=1, keepdims=True)
    logits_mask = 1.0 - jnp.eye(n, dtype=jnp.float32)
    mask = mask * logits_mask
    exp_logits = jnp.exp(logits) * logits_mask
    log_prob = logits - jnp.log(jnp.sum(exp_logits, axis=1, keepdims=True))
    mpp = jnp.sum(mask, axis=1)
    mpp = jnp.where(mpp < 1e-6, 1.0, mpp)
    mean_log_prob_pos = jnp.sum(mask * log_prob, axis=1) / mpp
    return jnp.mean(-mean_log_prob_pos)


if __name__ == "__main__":
    key = jax.random.PRNGKey(0)
    k_feat, k_lab = jax.random.split(key)

    # N = bsz * n_views = 140 -> padded to 256, feat_dim = 48 -> padded to 128.
    # block_rows=128, block_cols=128 gives a (2, 2) grid so the online column
    # reduction, the masked (diag/pad) and unmasked tile branches, and the
    # row/feature padding paths are all exercised.
    bsz, n_views, feat_dim = 70, 2, 48
    features = jax.random.normal(k_feat, (bsz, n_views, feat_dim), dtype=jnp.float32)
    features = features / jnp.linalg.norm(features, axis=-1, keepdims=True)
    labels = jax.random.randint(k_lab, (bsz,), 0, 4, dtype=jnp.int32)

    loss = supcon_loss(features, labels, temperature=0.07,
                       block_rows=128, block_cols=128)
    jax.block_until_ready(loss)

    ref = supcon_loss_ref(features, labels, temperature=0.07)
    assert jnp.allclose(loss, ref, rtol=2e-3, atol=2e-3), (loss, ref)

    print("KERNEL_OK")
</pallas_src>

<mosaic_0001>
module attributes {stable_mosaic.version = 11 : i64} {
  func.func @_supcon_kernel(%arg0: i32, %arg1: i32, %arg2: memref<128x128xbf16, #tpu.memory_space<vmem>>, %arg3: memref<128x128xbf16, #tpu.memory_space<vmem>>, %arg4: memref<128x1xi32, #tpu.memory_space<vmem>>, %arg5: memref<1x128xi32, #tpu.memory_space<vmem>>, %arg6: memref<128x1xf32, #tpu.memory_space<vmem>>, %arg7: memref<128x1xf32, #tpu.memory_space<vmem>>, %arg8: memref<128x1xf32, #tpu.memory_space<vmem>>, %arg9: memref<128x1xf32, #tpu.memory_space<vmem>>, %arg10: memref<128x1xf32, #tpu.memory_space<vmem>>) attributes {dimension_semantics = [#tpu.dimension_semantics<parallel>, #tpu.dimension_semantics<arbitrary>], iteration_bounds = array<i64: 2, 2>, scalar_prefetch = 0 : i64, scratch_operands = 3 : i64, tpu.core_type = #tpu.core_type<tc>, window_params = [{transform_indices = @transform_0, window_bounds = array<i64: 128, 128>}, {transform_indices = @transform_1, window_bounds = array<i64: 128, 128>}, {transform_indices = @transform_2, window_bounds = array<i64: 128, 1>}, {transform_indices = @transform_3, window_bounds = array<i64: 1, 128>}, {transform_indices = @transform_4, window_bounds = array<i64: 128, 1>}, {transform_indices = @transform_5, window_bounds = array<i64: 128, 1>}]} {
    %c0_i32 = arith.constant 0 : i32
    %0 = arith.cmpi eq, %arg1, %c0_i32 : i32
    %1 = arith.extui %0 : i1 to i32
    %c0_i32_0 = arith.constant 0 : i32
    %2 = arith.cmpi ne, %1, %c0_i32_0 : i32
    scf.if %2 {
      %cst_16 = arith.constant -1.000000e+30 : f32
      %31 = vector.broadcast %cst_16 : f32 to vector<128x1xf32>
      %c0_17 = arith.constant 0 : index
      %c0_18 = arith.constant 0 : index
      %32 = vector.load %arg8[%c0_17, %c0_18] : memref<128x1xf32, #tpu.memory_space<vmem>>, vector<128x1xf32>
      tpu.vector_store %arg8[%c0_17, %c0_18], %31 {strides = array<i32>} : memref<128x1xf32, #tpu.memory_space<vmem>>, vector<128x1xf32>,
      %cst_19 = arith.constant 0.000000e+00 : f32
      %33 = vector.broadcast %cst_19 : f32 to vector<128x1xf32>
      %c0_20 = arith.constant 0 : index
      %c0_21 = arith.constant 0 : index
      %34 = vector.load %arg9[%c0_20, %c0_21] : memref<128x1xf32, #tpu.memory_space<vmem>>, vector<128x1xf32>
      tpu.vector_store %arg9[%c0_20, %c0_21], %33 {strides = array<i32>} : memref<128x1xf32, #tpu.memory_space<vmem>>, vector<128x1xf32>,
      %cst_22 = arith.constant 0.000000e+00 : f32
      %35 = vector.broadcast %cst_22 : f32 to vector<128x1xf32>
      %c0_23 = arith.constant 0 : index
      %c0_24 = arith.constant 0 : index
      %36 = vector.load %arg10[%c0_23, %c0_24] : memref<128x1xf32, #tpu.memory_space<vmem>>, vector<128x1xf32>
      tpu.vector_store %arg10[%c0_23, %c0_24], %35 {strides = array<i32>} : memref<128x1xf32, #tpu.memory_space<vmem>>, vector<128x1xf32>,
    } else {
    }
    %c0 = arith.constant 0 : index
    %c0_1 = arith.constant 0 : index
    %3 = vector.load %arg2[%c0, %c0_1] : memref<128x128xbf16, #tpu.memory_space<vmem>>, vector<128x128xbf16>
    %c0_2 = arith.constant 0 : index
    %c0_3 = arith.constant 0 : index
    %4 = vector.load %arg3[%c0_2, %c0_3] : memref<128x128xbf16, #tpu.memory_space<vmem>>, vector<128x128xbf16>
    %cst = arith.constant dense<0.000000e+00> : vector<128x128xf32>
    %5 = tpu.matmul %3, %4, %cst {dimension_numbers = #tpu.dot_dimension_numbers<[1], [1], [0], [0], [0, 0, 1, 0], [], []>} : vector<128x128xbf16>, vector<128x128xbf16>, vector<128x128xf32> -> vector<128x128xf32>
    %cst_4 = arith.constant 14.2857141 : f32
    %6 = vector.broadcast %cst_4 : f32 to vector<128x128xf32>
    %7 = arith.mulf %5, %6 : vector<128x128xf32>
    %c0_5 = arith.constant 0 : index
    %c0_6 = arith.constant 0 : index
    %8 = vector.load %arg4[%c0_5, %c0_6] : memref<128x1xi32, #tpu.memory_space<vmem>>, vector<128x1xi32>
    %c0_7 = arith.constant 0 : index
    %c0_8 = arith.constant 0 : index
    %9 = vector.load %arg5[%c0_7, %c0_8] : memref<1x128xi32, #tpu.memory_space<vmem>>, vector<1x128xi32>
    %10 = vector.broadcast %8 : vector<128x1xi32> to vector<128x128xi32>
    %11 = vector.broadcast %9 : vector<1x128xi32> to vector<128x128xi32>
    %12 = arith.cmpi eq, %10, %11 : vector<128x128xi32>
    %c128_i32 = arith.constant 128 : i32
    %13 = arith.muli %arg0, %c128_i32 : i32
    %c128_i32_9 = arith.constant 128 : i32
    %14 = arith.muli %arg1, %c128_i32_9 : i32
    %c128_i32_10 = arith.constant 128 : i32
    %15 = arith.addi %14, %c128_i32_10 : i32
    %16 = arith.cmpi slt, %13, %15 : i32
    %c128_i32_11 = arith.constant 128 : i32
    %17 = arith.addi %13, %c128_i32_11 : i32
    %18 = arith.cmpi slt, %14, %17 : i32
    %19 = arith.andi %16, %18 : i1
    %c128_i32_12 = arith.constant 128 : i32
    %20 = arith.addi %14, %c128_i32_12 : i32
    %c140_i32 = arith.constant 140 : i32
    %21 = arith.cmpi sgt, %20, %c140_i32 : i32
    %22 = arith.ori %19, %21 : i1
    %23 = arith.extui %22 : i1 to i32
    %c0_i32_13 = arith.constant 0 : i32
    %24 = arith.cmpi ne, %23, %c0_i32_13 : i32
    scf.if %24 {
      %31 = tpu.iota {dimensions = array<i32: 0>} : vector<128x1xi32>
      %32 = vector.broadcast %13 : i32 to vector<128x1xi32>
      %33 = arith.addi %32, %31 : vector<128x1xi32>
      %34 = tpu.iota {dimensions = array<i32: 1>} : vector<1x128xi32>
      %35 = vector.broadcast %14 : i32 to vector<1x128xi32>
      %36 = arith.addi %35, %34 : vector<1x128xi32>
      %37 = vector.broadcast %33 : vector<128x1xi32> to vector<128x128xi32>
      %38 = vector.broadcast %36 : vector<1x128xi32> to vector<128x128xi32>
      %39 = arith.cmpi ne, %37, %38 : vector<128x128xi32>
      %c140_i32_16 = arith.constant 140 : i32
      %40 = vector.broadcast %c140_i32_16 : i32 to vector<1x128xi32>
      %41 = arith.cmpi slt, %36, %40 : vector<1x128xi32>
      %42 = vector.broadcast %41 : vector<1x128xi1> to vector<128x128xi1>
      %43 = arith.andi %39, %42 : vector<128x128xi1>
      %cst_17 = arith.constant -1.000000e+30 : f32
      %44 = vector.broadcast %cst_17 : f32 to vector<128x128xf32>
      %45 = arith.select %43, %7, %44 : vector<128x128xi1>, vector<128x128xf32>
      %46 = arith.andi %12, %43 : vector<128x128xi1>
      %c0_18 = arith.constant 0 : index
      %c0_19 = arith.constant 0 : index
      %47 = vector.load %arg10[%c0_18, %c0_19] : memref<128x1xf32, #tpu.memory_space<vmem>>, vector<128x1xf32>
      %cst_20 = arith.constant 0.000000e+00 : f32
      %48 = vector.broadcast %cst_20 : f32 to vector<128x128xf32>
      %49 = arith.select %46, %7, %48 : vector<128x128xi1>, vector<128x128xf32>
      %cst_21 = arith.constant dense<0.000000e+00> : vector<128xf32>
      %50 = vector.multi_reduction <add>, %49, %cst_21 [1] : vector<128x128xf32> to vector<128xf32>
      %51 = vector.shape_cast %50 : vector<128xf32> to vector<128x1xf32>
      %52 = arith.addf %47, %51 : vector<128x1xf32>
      %c0_22 = arith.constant 0 : index
      %c0_23 = arith.constant 0 : index
      %53 = vector.load %arg10[%c0_22, %c0_23] : memref<128x1xf32, #tpu.memory_space<vmem>>, vector<128x1xf32>
      tpu.vector_store %arg10[%c0_22, %c0_23], %52 {strides = array<i32>} : memref<128x1xf32, #tpu.memory_space<vmem>>, vector<128x1xf32>,
      %c0_24 = arith.constant 0 : index
      %c0_25 = arith.constant 0 : index
      %54 = vector.load %arg8[%c0_24, %c0_25] : memref<128x1xf32, #tpu.memory_space<vmem>>, vector<128x1xf32>
      %cst_26 = arith.constant dense<0xFF800000> : vector<128xf32>
      %55 = vector.multi_reduction <maximumf>, %45, %cst_26 [1] : vector<128x128xf32> to vector<128xf32>
      %56 = vector.shape_cast %55 : vector<128xf32> to vector<128x1xf32>
      %57 = arith.maximumf %54, %56 : vector<128x1xf32>
      %58 = arith.subf %54, %57 : vector<128x1xf32>
      %59 = math.exp %58 : vector<128x1xf32>
      %60 = vector.broadcast %57 : vector<128x1xf32> to vector<128x128xf32>
      %61 = arith.subf %45, %60 : vector<128x128xf32>
      %62 = math.exp %61 : vector<128x128xf32>
      %cst_27 = arith.constant dense<0.000000e+00> : vector<128xf32>
      %63 = vector.multi_reduction <add>, %62, %cst_27 [1] : vector<128x128xf32> to vector<128xf32>
      %64 = vector.shape_cast %63 : vector<128xf32> to vector<128x1xf32>
      %c0_28 = arith.constant 0 : index
      %c0_29 = arith.constant 0 : index
      %65 = vector.load %arg9[%c0_28, %c0_29] : memref<128x1xf32, #tpu.memory_space<vmem>>, vector<128x1xf32>
      %66 = arith.mulf %59, %65 : vector<128x1xf32>
      %67 = arith.addf %66, %64 : vector<128x1xf32>
      %c0_30 = arith.constant 0 : index
      %c0_31 = arith.constant 0 : index
      %68 = vector.load %arg9[%c0_30, %c0_31] : memref<128x1xf32, #tpu.memory_space<vmem>>, vector<128x1xf32>
      tpu.vector_store %arg9[%c0_30, %c0_31], %67 {strides = array<i32>} : memref<128x1xf32, #tpu.memory_space<vmem>>, vector<128x1xf32>,
      %c0_32 = arith.constant 0 : index
      %c0_33 = arith.constant 0 : index
      %69 = vector.load %arg8[%c0_32, %c0_33] : memref<128x1xf32, #tpu.memory_space<vmem>>, vector<128x1xf32>
      tpu.vector_store %arg8[%c0_32, %c0_33], %57 {strides = array<i32>} : memref<128x1xf32, #tpu.memory_space<vmem>>, vector<128x1xf32>,
    } else {
    }
    %true = arith.constant true
    %25 = arith.xori %22, %true : i1
    %26 = arith.extui %25 : i1 to i32
    %c0_i32_14 = arith.constant 0 : i32
    %27 = arith.cmpi ne, %26, %c0_i32_14 : i32
    scf.if %27 {
      %c0_16 = arith.constant 0 : index
      %c0_17 = arith.constant 0 : index
      %31 = vector.load %arg10[%c0_16, %c0_17] : memref<128x1xf32, #tpu.memory_space<vmem>>, vector<128x1xf32>
      %cst_18 = arith.constant 0.000000e+00 : f32
      %32 = vector.broadcast %cst_18 : f32 to vector<128x128xf32>
      %33 = arith.select %12, %7, %32 : vector<128x128xi1>, vector<128x128xf32>
      %cst_19 = arith.constant dense<0.000000e+00> : vector<128xf32>
      %34 = vector.multi_reduction <add>, %33, %cst_19 [1] : vector<128x128xf32> to vector<128xf32>
      %35 = vector.shape_cast %34 : vector<128xf32> to vector<128x1xf32>
      %36 = arith.addf %31, %35 : vector<128x1xf32>
      %c0_20 = arith.constant 0 : index
      %c0_21 = arith.constant 0 : index
      %37 = vector.load %arg10[%c0_20, %c0_21] : memref<128x1xf32, #tpu.memory_space<vmem>>, vector<128x1xf32>
      tpu.vector_store %arg10[%c0_20, %c0_21], %36 {strides = array<i32>} : memref<128x1xf32, #tpu.memory_space<vmem>>, vector<128x1xf32>,
      %c0_22 = arith.constant 0 : index
      %c0_23 = arith.constant 0 : index
      %38 = vector.load %arg8[%c0_22, %c0_23] : memref<128x1xf32, #tpu.memory_space<vmem>>, vector<128x1xf32>
      %cst_24 = arith.constant dense<0xFF800000> : vector<128xf32>
      %39 = vector.multi_reduction <maximumf>, %7, %cst_24 [1] : vector<128x128xf32> to vector<128xf32>
      %40 = vector.shape_cast %39 : vector<128xf32> to vector<128x1xf32>
      %41 = arith.maximumf %38, %40 : vector<128x1xf32>
      %42 = arith.subf %38, %41 : vector<128x1xf32>
      %43 = math.exp %42 : vector<128x1xf32>
      %44 = vector.broadcast %41 : vector<128x1xf32> to vector<128x128xf32>
      %45 = arith.subf %7, %44 : vector<128x128xf32>
      %46 = math.exp %45 : vector<128x128xf32>
      %cst_25 = arith.constant dense<0.000000e+00> : vector<128xf32>
      %47 = vector.multi_reduction <add>, %46, %cst_25 [1] : vector<128x128xf32> to vector<128xf32>
      %48 = vector.shape_cast %47 : vector<128xf32> to vector<128x1xf32>
      %c0_26 = arith.constant 0 : index
      %c0_27 = arith.constant 0 : index
      %49 = vector.load %arg9[%c0_26, %c0_27] : memref<128x1xf32, #tpu.memory_space<vmem>>, vector<128x1xf32>
      %50 = arith.mulf %43, %49 : vector<128x1xf32>
      %51 = arith.addf %50, %48 : vector<128x1xf32>
      %c0_28 = arith.constant 0 : index
      %c0_29 = arith.constant 0 : index
      %52 = vector.load %arg9[%c0_28, %c0_29] : memref<128x1xf32, #tpu.memory_space<vmem>>, vector<128x1xf32>
      tpu.vector_store %arg9[%c0_28, %c0_29], %51 {strides = array<i32>} : memref<128x1xf32, #tpu.memory_space<vmem>>, vector<128x1xf32>,
      %c0_30 = arith.constant 0 : index
      %c0_31 = arith.constant 0 : index
      %53 = vector.load %arg8[%c0_30, %c0_31] : memref<128x1xf32, #tpu.memory_space<vmem>>, vector<128x1xf32>
      tpu.vector_store %arg8[%c0_30, %c0_31], %41 {strides = array<i32>} : memref<128x1xf32, #tpu.memory_space<vmem>>, vector<128x1xf32>,
    } else {
    }
    %c1_i32 = arith.constant 1 : i32
    %28 = arith.cmpi eq, %arg1, %c1_i32 : i32
    %29 = arith.extui %28 : i1 to i32
    %c0_i32_15 = arith.constant 0 : i32
    %30 = arith.cmpi ne, %29, %c0_i32_15 : i32
    scf.if %30 {
      %c0_16 = arith.constant 0 : index
      %c0_17 = arith.constant 0 : index
      %31 = vector.load %arg6[%c0_16, %c0_17] : memref<128x1xf32, #tpu.memory_space<vmem>>, vector<128x1xf32>
      %c0_18 = arith.constant 0 : index
      %c0_19 = arith.constant 0 : index
      %32 = vector.load %arg8[%c0_18, %c0_19] : memref<128x1xf32, #tpu.memory_space<vmem>>, vector<128x1xf32>
      %c0_20 = arith.constant 0 : index
      %c0_21 = arith.constant 0 : index
      %33 = vector.load %arg9[%c0_20, %c0_21] : memref<128x1xf32, #tpu.memory_space<vmem>>, vector<128x1xf32>
      %cst_22 = arith.constant 1.000000e-30 : f32
      %34 = vector.broadcast %cst_22 : f32 to vector<128x1xf32>
      %35 = arith.maximumf %33, %34 : vector<128x1xf32>
      %36 = math.log %35 : vector<128x1xf32>
      %37 = arith.addf %32, %36 : vector<128x1xf32>
      %cst_23 = arith.constant 9.99999997E-7 : f32
      %38 = vector.broadcast %cst_23 : f32 to vector<128x1xf32>
      %39 = arith.cmpf olt, %31, %38 : vector<128x1xf32>
      %cst_24 = arith.constant 1.000000e+00 : f32
      %40 = vector.broadcast %cst_24 : f32 to vector<128x1xf32>
      %41 = arith.select %39, %40, %31 : vector<128x1xi1>, vector<128x1xf32>
      %42 = tpu.reciprocal %41 {approx = true} : vector<128x1xf32> -> vector<128x1xf32>
      %43 = arith.mulf %41, %42 : vector<128x1xf32>
      %cst_25 = arith.constant 2.000000e+00 : f32
      %44 = vector.broadcast %cst_25 : f32 to vector<128x1xf32>
      %45 = arith.subf %44, %43 : vector<128x1xf32>
      %46 = arith.mulf %42, %45 : vector<128x1xf32>
      %c0_26 = arith.constant 0 : index
      %c0_27 = arith.constant 0 : index
      %47 = vector.load %arg10[%c0_26, %c0_27] : memref<128x1xf32, #tpu.memory_space<vmem>>, vector<128x1xf32>
      %48 = arith.mulf %31, %37 : vector<128x1xf32>
      %49 = arith.subf %47, %48 : vector<128x1xf32>
      %cst_28 = arith.constant 0.000000e+00 : f32
      %50 = vector.broadcast %cst_28 : f32 to vector<128x1xf32>
      %51 = arith.subf %50, %49 : vector<128x1xf32>
      %52 = arith.mulf %51, %46 : vector<128x1xf32>
      %c0_29 = arith.constant 0 : index
      %c0_30 = arith.constant 0 : index
      %53 = vector.load %arg7[%c0_29, %c0_30] : memref<128x1xf32, #tpu.memory_space<vmem>>, vector<128x1xf32>
      tpu.vector_store %arg7[%c0_29, %c0_30], %52 {strides = array<i32>} : memref<128x1xf32, #tpu.memory_space<vmem>>, vector<128x1xf32>,
    } else {
    }
    return
  }
  func.func @transform_0(%arg0: i32, %arg1: i32) -> (i32, i32) {
    %c0_i32 = arith.constant 0 : i32
    %c0_i32_0 = arith.constant 0 : i32
    return %arg0, %c0_i32 : i32, i32
  }
  func.func @transform_1(%arg0: i32, %arg1: i32) -> (i32, i32) {
    %c0_i32 = arith.constant 0 : i32
    %c0_i32_0 = arith.constant 0 : i32
    return %arg1, %c0_i32 : i32, i32
  }
  func.func @transform_2(%arg0: i32, %arg1: i32) -> (i32, i32) {
    %c0_i32 = arith.constant 0 : i32
    %c0_i32_0 = arith.constant 0 : i32
    return %arg0, %c0_i32 : i32, i32
  }
  func.func @transform_3(%arg0: i32, %arg1: i32) -> (i32, i32) {
    %c0_i32 = arith.constant 0 : i32
    %c0_i32_0 = arith.constant 0 : i32
    return %c0_i32, %arg1 : i32, i32
  }
  func.func @transform_4(%arg0: i32, %arg1: i32) -> (i32, i32) {
    %c0_i32 = arith.constant 0 : i32
    %c0_i32_0 = arith.constant 0 : i32
    return %arg0, %c0_i32 : i32, i32
  }
  func.func @transform_5(%arg0: i32, %arg1: i32) -> (i32, i32) {
    %c0_i32 = arith.constant 0 : i32
    %c0_i32_0 = arith.constant 0 : i32
    return %arg0, %c0_i32 : i32, i32
  }
}

</mosaic_0001>

<llo_original>
// kernel: tpu_custom_call.1
$region0: #{tpu_custom_call.1}
  #allocation0 [shape = 'u32[]', space=smem, size = 0x4, offset = 0x4, fixed_abs, tag = 'smem constant byte address 0x4 - core index']
  #allocation1 [shape = 'u32[144,128]{1,0:T(1,128)}', space=vmem, size = 0x12000, scoped, tag = 'internal scratch']
  #allocation2 [shape = 'f32[128,1]{1,0:T(8,128)}', space=vmem, size = 0x10000, scoped, tag = 'scratch operand']
  #allocation3 [shape = 'f32[128,1]{1,0:T(8,128)}', space=vmem, size = 0x10000, scoped, tag = 'scratch operand']
  #allocation4 [shape = 'f32[128,1]{1,0:T(8,128)}', space=vmem, size = 0x10000, scoped, tag = 'scratch operand']
  %s0 = inlined_call_operand.vmem [shape: bf16[256,128], index: 0, kind: input, shape index: {}]
  %s1 = inlined_call_operand.vmem [shape: bf16[256,128], index: 1, kind: input, shape index: {}]
  %s2 = inlined_call_operand.vmem [shape: s32[256,1], index: 2, kind: input, shape index: {}]
  %s3 = inlined_call_operand.vmem [shape: s32[1,256], index: 3, kind: input, shape index: {}]
  %s4 = inlined_call_operand.vmem [shape: f32[256,1], index: 4, kind: input, shape index: {}]
  %s5 = inlined_call_operand.vmem [shape: f32[256,1], index: 5, kind: output, shape index: {}]
  %s6 = sld [smem:[#allocation0]]
  $region69: #{tpu_custom_call.1} parent=0
    _
  %s8 = ssub.s32 1, %s6
  %s9 = scalar_select 0, %s8, %s6
  loop: start=0, step=1, limit=6
  $region2: #{tpu_custom_call.1} parent=0 // loop_pre_header
    _
  $region3: #{tpu_custom_call.1} parent=0 // loop_header
    %s11 = sphi 0, %s15
    %p12 = scmp.ge.s32.totalorder %s11, 6
    %s18 = sphi 0, %s30
    %s19 = sphi 0, %s26
    %s20 = sphi 0, %s18
    %s21 = sphi 0, %s19
    %s22 = sphi 0, %s20
    %s23 = sphi 0, %s21
    %s33 = sphi 0, %s35
    %s36 = sphi 0, %s33
    %s37 = sphi 0, %s36
    %s53 = sphi 0, %s37
    %s59 = sphi 0, %s61
    %s62 = sphi 0, %s59
    %s63 = sphi 0, %s62
    %s79 = sphi 0, %s63
    %s85 = sphi 0, %s87
    %s88 = sphi 0, %s85
    %s89 = sphi 0, %s88
    %s105 = sphi 0, %s89
    %s111 = sphi 0, %s113
    %s114 = sphi 0, %s111
    %s115 = sphi 0, %s114
    %s131 = sphi 0, %s115
    %s137 = sphi 0, %s139
    %s140 = sphi 0, %s137
    %s141 = sphi 0, %s140
    %s157 = sphi 0, %s141
    %s163 = sphi 0, %s165
    %s166 = sphi 0, %s163
    %s167 = sphi 0, %s166
    %s183 = sphi 0, %s167
  $region4: #{tpu_custom_call.1} parent=0 // loop_header_branch
    %14 = sbr.rel (%p12) target = $region8
  $region5: #{tpu_custom_call.1} parent=0 // loop_body
    %s16 = ssub.s32 %s11, 1
    %s17 = ssub.s32 %s11, 2
    %s24 = sadd.s32 1, %s19
    %p25 = scmp.ge.s32.totalorder %s24, 2
    %s26 = scalar_select %p25, 0, %s24
    %s27 = sadd.s32 1, %s18
    %s28 = scalar_select %p25, %s27, %s18
    %p29 = scmp.ge.s32.totalorder %s28, 2
    %s30 = scalar_select %p29, 0, %s28
    %s31 = ssub.s32 %s18, %s30
    %p32 = scmp.eq.s32.totalorder %s31, 0
    %s34 = sadd.s32 %s33, 1
    %s35 = scalar_select %p32, %s33, %s34
    %p38 = pneg %p32
    %p39 = scmp.eq.s32.totalorder %s11, 3
    %p40 = por %p38, %p39
    %p41 = scmp.ne.s32.totalorder %s33, %s36
    %p42 = scmp.eq.s32.totalorder %s11, 0
    %p43 = por %p41, %p42
    %p44 = scmp.ne.s32.totalorder %s33, %s36
    %p45 = scmp.eq.s32.totalorder %s16, 3
    %p46 = por %p44, %p45
    %p47 = scmp.ne.s32.totalorder %s36, %s37
    %p48 = scmp.eq.s32.totalorder %s16, 0
    %p49 = por %p47, %p48
    %p50 = scmp.ne.s32.totalorder %s36, %s37
    %p51 = scmp.eq.s32.totalorder %s17, 3
    %p52 = por %p50, %p51
    %p54 = scmp.ne.s32.totalorder %s37, %s53
    %p55 = scmp.eq.s32.totalorder %s17, 0
    %p56 = por %p54, %p55
    %s57 = ssub.s32 %s19, %s26
    %p58 = scmp.eq.s32.totalorder %s57, 0
    %s60 = sadd.s32 %s59, 1
    %s61 = scalar_select %p58, %s59, %s60
    %p64 = pneg %p58
    %p65 = scmp.eq.s32.totalorder %s11, 3
    %p66 = por %p64, %p65
    %p67 = scmp.ne.s32.totalorder %s59, %s62
    %p68 = scmp.eq.s32.totalorder %s11, 0
    %p69 = por %p67, %p68
    %p70 = scmp.ne.s32.totalorder %s59, %s62
    %p71 = scmp.eq.s32.totalorder %s16, 3
    %p72 = por %p70, %p71
    %p73 = scmp.ne.s32.totalorder %s62, %s63
    %p74 = scmp.eq.s32.totalorder %s16, 0
    %p75 = por %p73, %p74
    %p76 = scmp.ne.s32.totalorder %s62, %s63
    %p77 = scmp.eq.s32.totalorder %s17, 3
    %p78 = por %p76, %p77
    %p80 = scmp.ne.s32.totalorder %s63, %s79
    %p81 = scmp.eq.s32.totalorder %s17, 0
    %p82 = por %p80, %p81
    %s83 = ssub.s32 %s18, %s30
    %p84 = scmp.eq.s32.totalorder %s83, 0
    %s86 = sadd.s32 %s85, 1
    %s87 = scalar_select %p84, %s85, %s86
    %p90 = pneg %p84
    %p91 = scmp.eq.s32.totalorder %s11, 3
    %p92 = por %p90, %p91
    %p93 = scmp.ne.s32.totalorder %s85, %s88
    %p94 = scmp.eq.s32.totalorder %s11, 0
    %p95 = por %p93, %p94
    %p96 = scmp.ne.s32.totalorder %s85, %s88
    %p97 = scmp.eq.s32.totalorder %s16, 3
    %p98 = por %p96, %p97
    %p99 = scmp.ne.s32.totalorder %s88, %s89
    %p100 = scmp.eq.s32.totalorder %s16, 0
    %p101 = por %p99, %p100
    %p102 = scmp.ne.s32.totalorder %s88, %s89
    %p103 = scmp.eq.s32.totalorder %s17, 3
    %p104 = por %p102, %p103
    %p106 = scmp.ne.s32.totalorder %s89, %s105
    %p107 = scmp.eq.s32.totalorder %s17, 0
    %p108 = por %p106, %p107
    %s109 = ssub.s32 %s19, %s26
    %p110 = scmp.eq.s32.totalorder %s109, 0
    %s112 = sadd.s32 %s111, 1
    %s113 = scalar_select %p110, %s111, %s112
    %p116 = pneg %p110
    %p117 = scmp.eq.s32.totalorder %s11, 3
    %p118 = por %p116, %p117
    %p119 = scmp.ne.s32.totalorder %s111, %s114
    %p120 = scmp.eq.s32.totalorder %s11, 0
    %p121 = por %p119, %p120
    %p122 = scmp.ne.s32.totalorder %s111, %s114
    %p123 = scmp.eq.s32.totalorder %s16, 3
    %p124 = por %p122, %p123
    %p125 = scmp.ne.s32.totalorder %s114, %s115
    %p126 = scmp.eq.s32.totalorder %s16, 0
    %p127 = por %p125, %p126
    %p128 = scmp.ne.s32.totalorder %s114, %s115
    %p129 = scmp.eq.s32.totalorder %s17, 3
    %p130 = por %p128, %p129
    %p132 = scmp.ne.s32.totalorder %s115, %s131
    %p133 = scmp.eq.s32.totalorder %s17, 0
    %p134 = por %p132, %p133
    %s135 = ssub.s32 %s18, %s30
    %p136 = scmp.eq.s32.totalorder %s135, 0
    %s138 = sadd.s32 %s137, 1
    %s139 = scalar_select %p136, %s137, %s138
    %p142 = pneg %p136
    %p143 = scmp.eq.s32.totalorder %s11, 3
    %p144 = por %p142, %p143
    %p145 = scmp.ne.s32.totalorder %s137, %s140
    %p146 = scmp.eq.s32.totalorder %s11, 0
    %p147 = por %p145, %p146
    %p148 = scmp.ne.s32.totalorder %s137, %s140
    %p149 = scmp.eq.s32.totalorder %s16, 3
    %p150 = por %p148, %p149
    %p151 = scmp.ne.s32.totalorder %s140, %s141
    %p152 = scmp.eq.s32.totalorder %s16, 0
    %p153 = por %p151, %p152
    %p154 = scmp.ne.s32.totalorder %s140, %s141
    %p155 = scmp.eq.s32.totalorder %s17, 3
    %p156 = por %p154, %p155
    %p158 = scmp.ne.s32.totalorder %s141, %s157
    %p159 = scmp.eq.s32.totalorder %s17, 0
    %p160 = por %p158, %p159
    %s161 = ssub.s32 %s18, %s30
    %p162 = scmp.eq.s32.totalorder %s161, 0
    %s164 = sadd.s32 %s163, 1
    %s165 = scalar_select %p162, %s163, %s164
    %p168 = pneg %p162
    %p169 = scmp.eq.s32.totalorder %s11, 3
    %p170 = por %p168, %p169
    %p171 = scmp.ne.s32.totalorder %s163, %s166
    %p172 = scmp.eq.s32.totalorder %s11, 0
    %p173 = por %p171, %p172
    %p174 = scmp.ne.s32.totalorder %s163, %s166
    %p175 = scmp.eq.s32.totalorder %s16, 3
    %p176 = por %p174, %p175
    %p177 = scmp.ne.s32.totalorder %s166, %s167
    %p178 = scmp.eq.s32.totalorder %s16, 0
    %p179 = por %p177, %p178
    %p180 = scmp.ne.s32.totalorder %s166, %s167
    %p181 = scmp.eq.s32.totalorder %s17, 3
    %p182 = por %p180, %p181
    %p184 = scmp.ne.s32.totalorder %s167, %s183
    %p185 = scmp.eq.s32.totalorder %s17, 0
    %p186 = por %p184, %p185
    %p187 = scmp.le.s32.totalorder 1, %s11
    %p188 = scmp.lt.s32.totalorder %s11, 5
    %p189 = pnand %p187, %p188
    %p190 = pneg %p189
    // Predicated region
    $region9: #{tpu_custom_call.1} parent=5 // pred_check
      _
    $region10: #{tpu_custom_call.1} parent=5 // pred_check_branch
      %192 = sbr.rel (%p189) target = $region12
    $region11: #{tpu_custom_call.1} parent=5 // pred_region
      %s193 = ssub.s32 %s11, 1
    $region12: #{tpu_custom_call.1} parent=5 // pred_fallthru
      _
    %p194 = scmp.lt.s32.totalorder %s11, 4
    // Predicated region
    $region13: #{tpu_custom_call.1} parent=5 // pred_check
      %p195 = pneg %p194
    $region14: #{tpu_custom_call.1} parent=5 // pred_check_branch
      %197 = sbr.rel (%p195) target = $region16
    $region15: #{tpu_custom_call.1} parent=5 // pred_region
      // Predicated region
      $region17: #{tpu_custom_call.1} parent=15 // pred_check
        %p198 = pneg %p43
      $region18: #{tpu_custom_call.1} parent=15 // pred_check_branch
        %200 = sbr.rel (%p198) target = $region20
      $region19: #{tpu_custom_call.1} parent=15 // pred_region
        %s201 = smul.u32 16, %s18
        %p202 = scmp.lt.s32.totalorder %s201, 31
        %s203 = scalar_select %p202, %s201, 31
        %s204 = smul.addr %s203, 4
        %s205 = scalar_lea.vmem %s0, %s204
        %s206 = smul.u32 16, %s18
      $region20: #{tpu_custom_call.1} parent=15 // pred_fallthru
        _
      // Predicated region
      $region21: #{tpu_custom_call.1} parent=15 // pred_check
        %p207 = pneg %p69
      $region22: #{tpu_custom_call.1} parent=15 // pred_check_branch
        %209 = sbr.rel (%p207) target = $region24
      $region23: #{tpu_custom_call.1} parent=15 // pred_region
        %s210 = smul.u32 16, %s19
        %p211 = scmp.lt.s32.totalorder %s210, 31
        %s212 = scalar_select %p211, %s210, 31
        %s213 = smul.addr %s212, 4
        %s214 = scalar_lea.vmem %s1, %s213
        %s215 = smul.u32 16, %s19
      $region24: #{tpu_custom_call.1} parent=15 // pred_fallthru
        _
      // Predicated region
      $region25: #{tpu_custom_call.1} parent=15 // pred_check
        %p216 = pneg %p95
      $region26: #{tpu_custom_call.1} parent=15 // pred_check_branch
        %218 = sbr.rel (%p216) target = $region28
      $region27: #{tpu_custom_call.1} parent=15 // pred_region
        %s219 = smul.u32 16, %s18
        %p220 = scmp.lt.s32.totalorder %s219, 31
        %s221 = scalar_select %p220, %s219, 31
        %s222 = smul.addr %s221, 8
        %s223 = scalar_lea.vmem %s2, %s222
        %s224 = smul.u32 16, %s18
      $region28: #{tpu_custom_call.1} parent=15 // pred_fallthru
        _
      // Predicated region
      $region29: #{tpu_custom_call.1} parent=15 // pred_check
        %p225 = pneg %p121
      $region30: #{tpu_custom_call.1} parent=15 // pred_check_branch
        %227 = sbr.rel (%p225) target = $region32
      $region31: #{tpu_custom_call.1} parent=15 // pred_region
        %p228 = scmp.lt.s32.totalorder %s19, 1
        %s229 = scalar_select %p228, %s19, 1
        %s230 = scalar_lea.vmem %s3, %s229
      $region32: #{tpu_custom_call.1} parent=15 // pred_fallthru
        _
      // Predicated region
      $region33: #{tpu_custom_call.1} parent=15 // pred_check
        %p231 = pneg %p147
      $region34: #{tpu_custom_call.1} parent=15 // pred_check_branch
        %233 = sbr.rel (%p231) target = $region36
      $region35: #{tpu_custom_call.1} parent=15 // pred_region
        %s234 = smul.u32 16, %s18
        %p235 = scmp.lt.s32.totalorder %s234, 31
        %s236 = scalar_select %p235, %s234, 31
        %s237 = smul.addr %s236, 8
        %s238 = scalar_lea.vmem %s4, %s237
        %s239 = smul.u32 16, %s18
      $region36: #{tpu_custom_call.1} parent=15 // pred_fallthru
        _
    $region16: #{tpu_custom_call.1} parent=5 // pred_fallthru
      _
    %p240 = scmp.le.s32.totalorder 1, %s11
    %p241 = scmp.lt.s32.totalorder %s11, 5
    %p242 = pnand %p240, %p241
    %p243 = pneg %p242
    // Predicated region
    $region37: #{tpu_custom_call.1} parent=5 // pred_check
      _
    $region38: #{tpu_custom_call.1} parent=5 // pred_check_branch
      %245 = sbr.rel (%p242) target = $region40
    $region39: #{tpu_custom_call.1} parent=5 // pred_region
      %s246 = ssub.s32 %s11, 1
      %s247 = smul.u32 16, %s20
      %p248 = scmp.lt.s32.totalorder %s247, 31
      %s249 = scalar_select %p248, %s247, 31
      %s250 = smul.addr %s249, 4
      %s251 = scalar_lea.vmem %s0, %s250
      %p252 = pneg %p49
      %p253 = pneg %p46
      %s254 = smul.u32 16, %s21
      %p255 = scmp.lt.s32.totalorder %s254, 31
      %s256 = scalar_select %p255, %s254, 31
      %s257 = smul.addr %s256, 4
      %s258 = scalar_lea.vmem %s1, %s257
      %p259 = pneg %p75
      %p260 = pneg %p72
      %s261 = smul.u32 16, %s20
      %p262 = scmp.lt.s32.totalorder %s261, 31
      %s263 = scalar_select %p262, %s261, 31
      %s264 = smul.addr %s263, 8
      %s265 = scalar_lea.vmem %s2, %s264
      %p266 = pneg %p101
      %p267 = pneg %p98
      %p268 = scmp.lt.s32.totalorder %s21, 1
      %s269 = scalar_select %p268, %s21, 1
      %s270 = scalar_lea.vmem %s3, %s269
      %p271 = pneg %p127
      %p272 = pneg %p124
      %s273 = smul.u32 16, %s20
      %p274 = scmp.lt.s32.totalorder %s273, 31
      %s275 = scalar_select %p274, %s273, 31
      %s276 = smul.addr %s275, 8
      %s277 = scalar_lea.vmem %s4, %s276
      %p278 = pneg %p153
      %p279 = pneg %p150
      %p280 = pneg %p179
      %p281 = pneg %p176
      %s282 = smul.u32 16, %s20
      %p283 = scmp.lt.s32.totalorder %s282, 31
      %s284 = scalar_select %p283, %s282, 31
      %s285 = smul.addr %s284, 8
      %s286 = scalar_lea.vmem %s5, %s285
      %s287 = smul.u32 16, %s20
      %p288 = scmp.lt.s32.totalorder %s287, 31
      %s289 = scalar_select %p288, %s287, 31
      %s290 = smul.addr %s289, 4
      %s291 = scalar_lea.vmem %s0, %s290
      %s292 = smul.u32 16, %s20
      %s293 = smul.u32 16, %s21
      %p294 = scmp.lt.s32.totalorder %s293, 31
      %s295 = scalar_select %p294, %s293, 31
      %s296 = smul.addr %s295, 4
      %s297 = scalar_lea.vmem %s1, %s296
      %s298 = smul.u32 16, %s21
      %s299 = smul.u32 16, %s20
      %p300 = scmp.lt.s32.totalorder %s299, 31
      %s301 = scalar_select %p300, %s299, 31
      %s302 = smul.addr %s301, 8
      %s303 = scalar_lea.vmem %s2, %s302
      %s304 = smul.u32 16, %s20
      %p305 = scmp.lt.s32.totalorder %s21, 1
      %s306 = scalar_select %p305, %s21, 1
      %s307 = scalar_lea.vmem %s3, %s306
      %s308 = smul.u32 16, %s20
      %p309 = scmp.lt.s32.totalorder %s308, 31
      %s310 = scalar_select %p309, %s308, 31
      %s311 = smul.addr %s310, 8
      %s312 = scalar_lea.vmem %s4, %s311
      %s313 = smul.u32 16, %s20
      %s314 = smul.u32 16, %s20
      %p315 = scmp.lt.s32.totalorder %s314, 31
      %s316 = scalar_select %p315, %s314, 31
      %s317 = smul.addr %s316, 8
      %s318 = scalar_lea.vmem %s5, %s317
      %s319 = smul.u32 16, %s20
      %p321 = scmp.eq.s32.totalorder %s21, 0
      // Predicated region
      $region41: #{tpu_custom_call.1} parent=39 // pred_check
        %p322 = pneg %p321
      $region42: #{tpu_custom_call.1} parent=39 // pred_check_branch
        %324 = sbr.rel (%p322) target = $region44
      $region43: #{tpu_custom_call.1} parent=39 // pred_region
        %vm325 = vcmask 7168
        %326 = vst.msk [vmem:[#allocation2] sm:$0xff] %vm325, -1e+30
        %327 = vst.msk [vmem:[#allocation2 + $0x8] sm:$0xff] %vm325, -1e+30
        %328 = vst.msk [vmem:[#allocation2 + $0x10] sm:$0xff] %vm325, -1e+30
        %329 = vst.msk [vmem:[#allocation2 + $0x18] sm:$0xff] %vm325, -1e+30
        %330 = vst.msk [vmem:[#allocation2 + $0x20] sm:$0xff] %vm325, -1e+30
        %331 = vst.msk [vmem:[#allocation2 + $0x28] sm:$0xff] %vm325, -1e+30
        %332 = vst.msk [vmem:[#allocation2 + $0x30] sm:$0xff] %vm325, -1e+30
        %333 = vst.msk [vmem:[#allocation2 + $0x38] sm:$0xff] %vm325, -1e+30
        %334 = vst.msk [vmem:[#allocation2 + $0x40] sm:$0xff] %vm325, -1e+30
        %335 = vst.msk [vmem:[#allocation2 + $0x48] sm:$0xff] %vm325, -1e+30
        %336 = vst.msk [vmem:[#allocation2 + $0x50] sm:$0xff] %vm325, -1e+30
        %337 = vst.msk [vmem:[#allocation2 + $0x58] sm:$0xff] %vm325, -1e+30
        %338 = vst.msk [vmem:[#allocation2 + $0x60] sm:$0xff] %vm325, -1e+30
        %339 = vst.msk [vmem:[#allocation2 + $0x68] sm:$0xff] %vm325, -1e+30
        %340 = vst.msk [vmem:[#allocation2 + $0x70] sm:$0xff] %vm325, -1e+30
        %341 = vst.msk [vmem:[#allocation2 + $0x78] sm:$0xff] %vm325, -1e+30
        %342 = vst.msk [vmem:[#allocation3] sm:$0xff] %vm325, 0.0
        %343 = vst.msk [vmem:[#allocation3 + $0x8] sm:$0xff] %vm325, 0.0
        %344 = vst.msk [vmem:[#allocation3 + $0x10] sm:$0xff] %vm325, 0.0
        %345 = vst.msk [vmem:[#allocation3 + $0x18] sm:$0xff] %vm325, 0.0
        %346 = vst.msk [vmem:[#allocation3 + $0x20] sm:$0xff] %vm325, 0.0
        %347 = vst.msk [vmem:[#allocation3 + $0x28] sm:$0xff] %vm325, 0.0
        %348 = vst.msk [vmem:[#allocation3 + $0x30] sm:$0xff] %vm325, 0.0
        %349 = vst.msk [vmem:[#allocation3 + $0x38] sm:$0xff] %vm325, 0.0
        %350 = vst.msk [vmem:[#allocation3 + $0x40] sm:$0xff] %vm325, 0.0
        %351 = vst.msk [vmem:[#allocation3 + $0x48] sm:$0xff] %vm325, 0.0
        %352 = vst.msk [vmem:[#allocation3 + $0x50] sm:$0xff] %vm325, 0.0
        %353 = vst.msk [vmem:[#allocation3 + $0x58] sm:$0xff] %vm325, 0.0
        %354 = vst.msk [vmem:[#allocation3 + $0x60] sm:$0xff] %vm325, 0.0
        %355 = vst.msk [vmem:[#allocation3 + $0x68] sm:$0xff] %vm325, 0.0
        %356 = vst.msk [vmem:[#allocation3 + $0x70] sm:$0xff] %vm325, 0.0
        %357 = vst.msk [vmem:[#allocation3 + $0x78] sm:$0xff] %vm325, 0.0
        %358 = vst.msk [vmem:[#allocation4] sm:$0xff] %vm325, 0.0
        %359 = vst.msk [vmem:[#allocation4 + $0x8] sm:$0xff] %vm325, 0.0
        %360 = vst.msk [vmem:[#allocation4 + $0x10] sm:$0xff] %vm325, 0.0
        %361 = vst.msk [vmem:[#allocation4 + $0x18] sm:$0xff] %vm325, 0.0
        %362 = vst.msk [vmem:[#allocation4 + $0x20] sm:$0xff] %vm325, 0.0
        %363 = vst.msk [vmem:[#allocation4 + $0x28] sm:$0xff] %vm325, 0.0
        %364 = vst.msk [vmem:[#allocation4 + $0x30] sm:$0xff] %vm325, 0.0
        %365 = vst.msk [vmem:[#allocation4 + $0x38] sm:$0xff] %vm325, 0.0
        %366 = vst.msk [vmem:[#allocation4 + $0x40] sm:$0xff] %vm325, 0.0
        %367 = vst.msk [vmem:[#allocation4 + $0x48] sm:$0xff] %vm325, 0.0
        %368 = vst.msk [vmem:[#allocation4 + $0x50] sm:$0xff] %vm325, 0.0
        %369 = vst.msk [vmem:[#allocation4 + $0x58] sm:$0xff] %vm325, 0.0
        %370 = vst.msk [vmem:[#allocation4 + $0x60] sm:$0xff] %vm325, 0.0
        %371 = vst.msk [vmem:[#allocation4 + $0x68] sm:$0xff] %vm325, 0.0
        %372 = vst.msk [vmem:[#allocation4 + $0x70] sm:$0xff] %vm325, 0.0
        %373 = vst.msk [vmem:[#allocation4 + $0x78] sm:$0xff] %vm325, 0.0
      $region44: #{tpu_custom_call.1} parent=39 // pred_fallthru
        _
      %v374 = vld [vmem:[%s291] sm:$0xf]
      %v375 = vld [vmem:[%s291 + $0x4] sm:$0xf]
      %v376 = vld [vmem:[%s291 + $0x8] sm:$0xf]
      %v377 = vld [vmem:[%s291 + $0xc] sm:$0xf]
      %v378 = vld [vmem:[%s291 + $0x10] sm:$0xf]
      %v379 = vld [vmem:[%s291 + $0x14] sm:$0xf]
      %v380 = vld [vmem:[%s291 + $0x18] sm:$0xf]
      %v381 = vld [vmem:[%s291 + $0x1c] sm:$0xf]
      %v382 = vld [vmem:[%s291 + $0x20] sm:$0xf]
      %v383 = vld [vmem:[%s291 + $0x24] sm:$0xf]
      %v384 = vld [vmem:[%s291 + $0x28] sm:$0xf]
      %v385 = vld [vmem:[%s291 + $0x2c] sm:$0xf]
      %v386 = vld [vmem:[%s291 + $0x30] sm:$0xf]
      %v387 = vld [vmem:[%s291 + $0x34] sm:$0xf]
      %v388 = vld [vmem:[%s291 + $0x38] sm:$0xf]
      %v389 = vld [vmem:[%s291 + $0x3c] sm:$0xf]
      %v390 = vld [vmem:[%s297] sm:$0xf]
      %v391 = vld [vmem:[%s297 + $0x4] sm:$0xf]
      %v392 = vld [vmem:[%s297 + $0x8] sm:$0xf]
      %v393 = vld [vmem:[%s297 + $0xc] sm:$0xf]
      %v394 = vld [vmem:[%s297 + $0x10] sm:$0xf]
      %v395 = vld [vmem:[%s297 + $0x14] sm:$0xf]
      %v396 = vld [vmem:[%s297 + $0x18] sm:$0xf]
      %v397 = vld [vmem:[%s297 + $0x1c] sm:$0xf]
      %v398 = vld [vmem:[%s297 + $0x20] sm:$0xf]
      %v399 = vld [vmem:[%s297 + $0x24] sm:$0xf]
      %v400 = vld [vmem:[%s297 + $0x28] sm:$0xf]
      %v401 = vld [vmem:[%s297 + $0x2c] sm:$0xf]
      %v402 = vld [vmem:[%s297 + $0x30] sm:$0xf]
      %v403 = vld [vmem:[%s297 + $0x34] sm:$0xf]
      %v404 = vld [vmem:[%s297 + $0x38] sm:$0xf]
      %v405 = vld [vmem:[%s297 + $0x3c] sm:$0xf]
      %v422 = vunpack.c.l.b16 %v374
      %v423 = vunpack.c.l.b16 %v375
      %v424 = vunpack.c.l.b16 %v376
      %v425 = vunpack.c.l.b16 %v377
      %v426 = vunpack.c.l.b16 %v378
      %v427 = vunpack.c.l.b16 %v379
      %v428 = vunpack.c.l.b16 %v380
      %v429 = vunpack.c.l.b16 %v381
      %v430 = vunpack.c.l.b16 %v382
      %v431 = vunpack.c.l.b16 %v383
      %v432 = vunpack.c.l.b16 %v384
      %v433 = vunpack.c.l.b16 %v385
      %v434 = vunpack.c.l.b16 %v386
      %v435 = vunpack.c.l.b16 %v387
      %v436 = vunpack.c.l.b16 %v388
      %v437 = vunpack.c.l.b16 %v389
      %v438 = vpack.c.b16 %v423, %v422
      %v439 = vpack.c.b16 %v425, %v424
      %v440 = vpack.c.b16 %v427, %v426
      %v441 = vpack.c.b16 %v429, %v428
      %v442 = vpack.c.b16 %v431, %v430
      %v443 = vpack.c.b16 %v433, %v432
      %v444 = vpack.c.b16 %v435, %v434
      %v445 = vpack.c.b16 %v437, %v436
      %v470 = vunpack.c.l.b16 %v390
      %v471 = vunpack.c.l.b16 %v391
      %v472 = vunpack.c.l.b16 %v392
      %v473 = vunpack.c.l.b16 %v393
      %v474 = vunpack.c.l.b16 %v394
      %v475 = vunpack.c.l.b16 %v395
      %v476 = vunpack.c.l.b16 %v396
      %v477 = vunpack.c.l.b16 %v397
      %v478 = vunpack.c.l.b16 %v398
      %v479 = vunpack.c.l.b16 %v399
      %v480 = vunpack.c.l.b16 %v400
      %v481 = vunpack.c.l.b16 %v401
      %v482 = vunpack.c.l.b16 %v402
      %v483 = vunpack.c.l.b16 %v403
      %v484 = vunpack.c.l.b16 %v404
      %v485 = vunpack.c.l.b16 %v405
      %v486 = vpack.c.b16 %v471, %v470
      %v487 = vpack.c.b16 %v473, %v472
      %v488 = vpack.c.b16 %v475, %v474
      %v489 = vpack.c.b16 %v477, %v476
      %v490 = vpack.c.b16 %v479, %v478
      %v491 = vpack.c.b16 %v481, %v480
      %v492 = vpack.c.b16 %v483, %v482
      %v493 = vpack.c.b16 %v485, %v484
      %502 = vmatprep.subr.bf16.mxu0 0
      %503 = vmatpush1.bf16.xpose.msra.mxu0 %v486
      %504 = vmatprep.subr.bf16.mxu0 0
      %505 = vmatpush1.bf16.xpose.msra.mxu0 %v487
      %506 = vmatprep.subr.bf16.mxu0 0
      %507 = vmatpush1.bf16.xpose.msra.mxu0 %v488
      %508 = vmatprep.subr.bf16.mxu0 0
      %509 = vmatpush1.bf16.xpose.msra.mxu0 %v489
      %510 = vmatprep.subr.bf16.mxu0 0
      %511 = vmatpush1.bf16.xpose.msra.mxu0 %v490
      %512 = vmatprep.subr.bf16.mxu0 0
      %513 = vmatpush1.bf16.xpose.msra.mxu0 %v491
      %514 = vmatprep.subr.bf16.mxu0 0
      %515 = vmatpush1.bf16.xpose.msra.mxu0 %v492
      %516 = vmatprep.subr.bf16.mxu0 0
      %517 = vmatpush1.bf16.xpose.msra.mxu0 %v493
      %518 = vmatprep.subr.bf16.mxu0 0
      %519 = vmatpush1.bf16.xpose.msra.mxu0 0
      %520 = vmatprep.subr.bf16.mxu0 0
      %521 = vmatpush1.bf16.xpose.msra.mxu0 0
      %522 = vmatprep.subr.bf16.mxu0 0
      %523 = vmatpush1.bf16.xpose.msra.mxu0 0
      %524 = vmatprep.subr.bf16.mxu0 0
      %525 = vmatpush1.bf16.xpose.msra.mxu0 0
      %526 = vmatprep.subr.bf16.mxu0 0
      %527 = vmatpush1.bf16.xpose.msra.mxu0 0
      %528 = vmatprep.subr.bf16.mxu0 0
      %529 = vmatpush1.bf16.xpose.msra.mxu0 0
      %530 = vmatprep.subr.bf16.mxu0 0
      %531 = vmatpush1.bf16.xpose.msra.mxu0 0
      %532 = vmatprep.subr.bf16.mxu0 0
      %533 = vmatpush1.bf16.xpose.msra.mxu0 0
      %534 = vmatprep.mubr.bf16.mxu0 0
      %535 = vmatmul.mubr.bf16.gmra.mrb[0].mxu0 %v438
      %v536 = vpop.f32.mrb[0].mxu0
      %v537 = vadd.f32 0.0, %v536
      %v538 = vpop.f32.mrb[0].mxu0
      %v539 = vpop.f32.mrb[0].mxu0
      %v540 = vadd.f32 0.0, %v539
      %v541 = vpop.f32.mrb[0].mxu0
      %542 = vmatprep.mubr.bf16.mxu0 0
      %543 = vmatmul.mubr.bf16.gmra.mrb[0].mxu0 %v439
      %v544 = vpop.f32.mrb[0].mxu0
      %v545 = vadd.f32 0.0, %v544
      %v546 = vpop.f32.mrb[0].mxu0
      %v547 = vpop.f32.mrb[0].mxu0
      %v548 = vadd.f32 0.0, %v547
      %v549 = vpop.f32.mrb[0].mxu0
      %550 = vmatprep.mubr.bf16.mxu0 0
      %551 = vmatmul.mubr.bf16.gmra.mrb[0].mxu0 %v440
      %v552 = vpop.f32.mrb[0].mxu0
      %v553 = vadd.f32 0.0, %v552
      %v554 = vpop.f32.mrb[0].mxu0
      %v555 = vpop.f32.mrb[0].mxu0
      %v556 = vadd.f32 0.0, %v555
      %v557 = vpop.f32.mrb[0].mxu0
      %558 = vmatprep.mubr.bf16.mxu0 0
      %559 = vmatmul.mubr.bf16.gmra.mrb[0].mxu0 %v441
      %v560 = vpop.f32.mrb[0].mxu0
      %v561 = vadd.f32 0.0, %v560
      %v562 = vpop.f32.mrb[0].mxu0
      %v563 = vpop.f32.mrb[0].mxu0
      %v564 = vadd.f32 0.0, %v563
      %v565 = vpop.f32.mrb[0].mxu0
      %566 = vmatprep.mubr.bf16.mxu0 0
      %567 = vmatmul.mubr.bf16.gmra.mrb[0].mxu0 %v442
      %v568 = vpop.f32.mrb[0].mxu0
      %v569 = vadd.f32 0.0, %v568
      %v570 = vpop.f32.mrb[0].mxu0
      %v571 = vpop.f32.mrb[0].mxu0
      %v572 = vadd.f32 0.0, %v571
      %v573 = vpop.f32.mrb[0].mxu0
      %574 = vmatprep.mubr.bf16.mxu0 0
      %575 = vmatmul.mubr.bf16.gmra.mrb[0].mxu0 %v443
      %v576 = vpop.f32.mrb[0].mxu0
      %v577 = vadd.f32 0.0, %v576
      %v578 = vpop.f32.mrb[0].mxu0
      %v579 = vpop.f32.mrb[0].mxu0
      %v580 = vadd.f32 0.0, %v579
      %v581 = vpop.f32.mrb[0].mxu0
      %582 = vmatprep.mubr.bf16.mxu0 0
      %583 = vmatmul.mubr.bf16.gmra.mrb[0].mxu0 %v444
      %v584 = vpop.f32.mrb[0].mxu0
      %v585 = vadd.f32 0.0, %v584
      %v586 = vpop.f32.mrb[0].mxu0
      %v587 = vpop.f32.mrb[0].mxu0
      %v588 = vadd.f32 0.0, %v587
      %v589 = vpop.f32.mrb[0].mxu0
      %590 = vmatprep.mubr.bf16.mxu0 0
      %591 = vmatmul.mubr.bf16.gmra.mrb[0].mxu0 %v445
      %v592 = vpop.f32.mrb[0].mxu0
      %v593 = vadd.f32 0.0, %v592
      %v594 = vpop.f32.mrb[0].mxu0
      %v595 = vpop.f32.mrb[0].mxu0
      %v596 = vadd.f32 0.0, %v595
      %v597 = vpop.f32.mrb[0].mxu0
      %598 = vdwg.mxu0
      %v599 = vmul.f32 %v537, 14.285714
      %v600 = vmul.f32 %v540, 14.285714
      %v601 = vmul.f32 %v545, 14.285714
      %v602 = vmul.f32 %v548, 14.285714
      %v603 = vmul.f32 %v553, 14.285714
      %v604 = vmul.f32 %v556, 14.285714
      %v605 = vmul.f32 %v561, 14.285714
      %v606 = vmul.f32 %v564, 14.285714
      %v607 = vmul.f32 %v569, 14.285714
      %v608 = vmul.f32 %v572, 14.285714
      %v609 = vmul.f32 %v577, 14.285714
      %v610 = vmul.f32 %v580, 14.285714
      %v611 = vmul.f32 %v585, 14.285714
      %v612 = vmul.f32 %v588, 14.285714
      %v613 = vmul.f32 %v593, 14.285714
      %v614 = vmul.f32 %v596, 14.285714
      %v615 = vld [vmem:[%s303] sm:$0xff]
      %v616 = vld [vmem:[%s303 + $0x8] sm:$0xff]
      %v617 = vld [vmem:[%s303 + $0x10] sm:$0xff]
      %v618 = vld [vmem:[%s303 + $0x18] sm:$0xff]
      %v619 = vld [vmem:[%s303 + $0x20] sm:$0xff]
      %v620 = vld [vmem:[%s303 + $0x28] sm:$0xff]
      %v621 = vld [vmem:[%s303 + $0x30] sm:$0xff]
      %v622 = vld [vmem:[%s303 + $0x38] sm:$0xff]
      %v623 = vld [vmem:[%s303 + $0x40] sm:$0xff]
      %v624 = vld [vmem:[%s303 + $0x48] sm:$0xff]
      %v625 = vld [vmem:[%s303 + $0x50] sm:$0xff]
      %v626 = vld [vmem:[%s303 + $0x58] sm:$0xff]
      %v627 = vld [vmem:[%s303 + $0x60] sm:$0xff]
      %v628 = vld [vmem:[%s303 + $0x68] sm:$0xff]
      %v629 = vld [vmem:[%s303 + $0x70] sm:$0xff]
      %v630 = vld [vmem:[%s303 + $0x78] sm:$0xff]
      %v631 = vld [vmem:[%s307] sm:$0x1]
      %632 = vset.pattern.permute.xlu0 0
      %633 = vperm.xlu0 %632, %v615
      %v634 = vpop.permute.xlu0 %633
      %635 = vset.pattern.permute.xlu0 0
      %636 = vperm.xlu0 %635, %v616
      %v637 = vpop.permute.xlu0 %636
      %638 = vset.pattern.permute.xlu0 0
      %639 = vperm.xlu0 %638, %v617
      %v640 = vpop.permute.xlu0 %639
      %641 = vset.pattern.permute.xlu0 0
      %642 = vperm.xlu0 %641, %v618
      %v643 = vpop.permute.xlu0 %642
      %644 = vset.pattern.permute.xlu0 0
      %645 = vperm.xlu0 %644, %v619
      %v646 = vpop.permute.xlu0 %645
      %647 = vset.pattern.permute.xlu0 0
      %648 = vperm.xlu0 %647, %v620
      %v649 = vpop.permute.xlu0 %648
      %650 = vset.pattern.permute.xlu0 0
      %651 = vperm.xlu0 %650, %v621
      %v652 = vpop.permute.xlu0 %651
      %653 = vset.pattern.permute.xlu0 0
      %654 = vperm.xlu0 %653, %v622
      %v655 = vpop.permute.xlu0 %654
      %656 = vset.pattern.permute.xlu0 0
      %657 = vperm.xlu0 %656, %v623
      %v658 = vpop.permute.xlu0 %657
      %659 = vset.pattern.permute.xlu0 0
      %660 = vperm.xlu0 %659, %v624
      %v661 = vpop.permute.xlu0 %660
      %662 = vset.pattern.permute.xlu0 0
      %663 = vperm.xlu0 %662, %v625
      %v664 = vpop.permute.xlu0 %663
      %665 = vset.pattern.permute.xlu0 0
      %666 = vperm.xlu0 %665, %v626
      %v667 = vpop.permute.xlu0 %666
      %668 = vset.pattern.permute.xlu0 0
      %669 = vperm.xlu0 %668, %v627
      %v670 = vpop.permute.xlu0 %669
      %671 = vset.pattern.permute.xlu0 0
      %672 = vperm.xlu0 %671, %v628
      %v673 = vpop.permute.xlu0 %672
      %674 = vset.pattern.permute.xlu0 0
      %675 = vperm.xlu0 %674, %v629
      %v676 = vpop.permute.xlu0 %675
      %677 = vset.pattern.permute.xlu0 0
      %678 = vperm.xlu0 %677, %v630
      %v679 = vpop.permute.xlu0 %678
      %v680 = vlaneseq
      %v681 = vshrl.u32 %v680, 7
      %v682 = vsub.s32 0, %v681
      %v683 = vrot.slane %v631, %v682
      %vm684 = vcmp.eq.s32.totalorder %v634, %v683
      %vm685 = vcmp.eq.s32.totalorder %v637, %v683
      %vm686 = vcmp.eq.s32.totalorder %v640, %v683
      %vm687 = vcmp.eq.s32.totalorder %v643, %v683
      %vm688 = vcmp.eq.s32.totalorder %v646, %v683
      %vm689 = vcmp.eq.s32.totalorder %v649, %v683
      %vm690 = vcmp.eq.s32.totalorder %v652, %v683
      %vm691 = vcmp.eq.s32.totalorder %v655, %v683
      %vm692 = vcmp.eq.s32.totalorder %v658, %v683
      %vm693 = vcmp.eq.s32.totalorder %v661, %v683
      %vm694 = vcmp.eq.s32.totalorder %v664, %v683
      %vm695 = vcmp.eq.s32.totalorder %v667, %v683
      %vm696 = vcmp.eq.s32.totalorder %v670, %v683
      %vm697 = vcmp.eq.s32.totalorder %v673, %v683
      %vm698 = vcmp.eq.s32.totalorder %v676, %v683
      %vm699 = vcmp.eq.s32.totalorder %v679, %v683
      %s700 = smul.u32 %s20, 128
      %s701 = smul.u32 %s21, 128
      %s702 = sadd.s32 %s701, 128
      %p703 = scmp.lt.s32.totalorder %s700, %s702
      %s704 = sadd.s32 %s700, 128
      %p705 = scmp.lt.s32.totalorder %s701, %s704
      %p706 = pnand %p703, %p705
      %p707 = pneg %p706
      %p708 = scmp.gt.s32.totalorder %s702, 140
      %p709 = por %p707, %p708
      // Predicated region
      $region45: #{tpu_custom_call.1} parent=39 // pred_check
        %p710 = pneg %p709
      $region46: #{tpu_custom_call.1} parent=39 // pred_check_branch
        %712 = sbr.rel (%p710) target = $region48
      $region47: #{tpu_custom_call.1} parent=39 // pred_region
        %v713 = vlaneseq
        %v714 = vshrl.u32 %v713, 7
        %v715 = vadd.s32 %v714, 8
        %v716 = vadd.s32 %v714, 16
        %v717 = vadd.s32 %v714, 24
        %v718 = vadd.s32 %v714, 32
        %v719 = vadd.s32 %v714, 40
        %v720 = vadd.s32 %v714, 48
        %v721 = vadd.s32 %v714, 56
        %v722 = vadd.s32 %v714, 64
        %v723 = vadd.s32 %v714, 72
        %v724 = vadd.s32 %v714, 80
        %v725 = vadd.s32 %v714, 88
        %v726 = vadd.s32 %v714, 96
        %v727 = vadd.s32 %v714, 104
        %v728 = vadd.s32 %v714, 112
        %v729 = vadd.s32 %v714, 120
        %v730 = vstv %s700
        %v731 = vadd.s32 %v730, %v714
        %v732 = vadd.s32 %v730, %v715
        %v733 = vadd.s32 %v730, %v716
        %v734 = vadd.s32 %v730, %v717
        %v735 = vadd.s32 %v730, %v718
        %v736 = vadd.s32 %v730, %v719
        %v737 = vadd.s32 %v730, %v720
        %v738 = vadd.s32 %v730, %v721
        %v739 = vadd.s32 %v730, %v722
        %v740 = vadd.s32 %v730, %v723
        %v741 = vadd.s32 %v730, %v724
        %v742 = vadd.s32 %v730, %v725
        %v743 = vadd.s32 %v730, %v726
        %v744 = vadd.s32 %v730, %v727
        %v745 = vadd.s32 %v730, %v728
        %v746 = vadd.s32 %v730, %v729
        %v747 = vlaneseq
        %v748 = vand.u32 %v747, 127
        %v749 = vstv %s701
        %v750 = vadd.s32 %v749, %v748
        %vm751 = vcmp.ne.s32.totalorder %v731, %v750
        %vm752 = vcmp.ne.s32.totalorder %v732, %v750
        %vm753 = vcmp.ne.s32.totalorder %v733, %v750
        %vm754 = vcmp.ne.s32.totalorder %v734, %v750
        %vm755 = vcmp.ne.s32.totalorder %v735, %v750
        %vm756 = vcmp.ne.s32.totalorder %v736, %v750
        %vm757 = vcmp.ne.s32.totalorder %v737, %v750
        %vm758 = vcmp.ne.s32.totalorder %v738, %v750
        %vm759 = vcmp.ne.s32.totalorder %v739, %v750
        %vm760 = vcmp.ne.s32.totalorder %v740, %v750
        %vm761 = vcmp.ne.s32.totalorder %v741, %v750
        %vm762 = vcmp.ne.s32.totalorder %v742, %v750
        %vm763 = vcmp.ne.s32.totalorder %v743, %v750
        %vm764 = vcmp.ne.s32.totalorder %v744, %v750
        %vm765 = vcmp.ne.s32.totalorder %v745, %v750
        %vm766 = vcmp.ne.s32.totalorder %v746, %v750
        %vm767 = vcmp.lt.s32.totalorder %v750, 140
        %v768 = vsel %vm767, 1, 0
        %vm769 = vcmp.eq.s32.totalorder %v768, 1
        %vm770 = vmand %vm751, %vm769
        %vm771 = vmand %vm752, %vm769
        %vm772 = vmand %vm753, %vm769
        %vm773 = vmand %vm754, %vm769
        %vm774 = vmand %vm755, %vm769
        %vm775 = vmand %vm756, %vm769
        %vm776 = vmand %vm757, %vm769
        %vm777 = vmand %vm758, %vm769
        %vm778 = vmand %vm759, %vm769
        %vm779 = vmand %vm760, %vm769
        %vm780 = vmand %vm761, %vm769
        %vm781 = vmand %vm762, %vm769
        %vm782 = vmand %vm763, %vm769
        %vm783 = vmand %vm764, %vm769
        %vm784 = vmand %vm765, %vm769
        %vm785 = vmand %vm766, %vm769
        %v786 = vsel %vm770, %v599, -1e+30
        %v787 = vsel %vm771, %v600, -1e+30
        %v788 = vsel %vm772, %v601, -1e+30
        %v789 = vsel %vm773, %v602, -1e+30
        %v790 = vsel %vm774, %v603, -1e+30
        %v791 = vsel %vm775, %v604, -1e+30
        %v792 = vsel %vm776, %v605, -1e+30
        %v793 = vsel %vm777, %v606, -1e+30
        %v794 = vsel %vm778, %v607, -1e+30
        %v795 = vsel %vm779, %v608, -1e+30
        %v796 = vsel %vm780, %v609, -1e+30
        %v797 = vsel %vm781, %v610, -1e+30
        %v798 = vsel %vm782, %v611, -1e+30
        %v799 = vsel %vm783, %v612, -1e+30
        %v800 = vsel %vm784, %v613, -1e+30
        %v801 = vsel %vm785, %v614, -1e+30
        %vm802 = vmand %vm684, %vm770
        %vm803 = vmand %vm685, %vm771
        %vm804 = vmand %vm686, %vm772
        %vm805 = vmand %vm687, %vm773
        %vm806 = vmand %vm688, %vm774
        %vm807 = vmand %vm689, %vm775
        %vm808 = vmand %vm690, %vm776
        %vm809 = vmand %vm691, %vm777
        %vm810 = vmand %vm692, %vm778
        %vm811 = vmand %vm693, %vm779
        %vm812 = vmand %vm694, %vm780
        %vm813 = vmand %vm695, %vm781
        %vm814 = vmand %vm696, %vm782
        %vm815 = vmand %vm697, %vm783
        %vm816 = vmand %vm698, %vm784
        %vm817 = vmand %vm699, %vm785
        %v818 = vld [vmem:[#allocation4] sm:$0xff]
        %v819 = vld [vmem:[#allocation4 + $0x8] sm:$0xff]
        %v820 = vld [vmem:[#allocation4 + $0x10] sm:$0xff]
        %v821 = vld [vmem:[#allocation4 + $0x18] sm:$0xff]
        %v822 = vld [vmem:[#allocation4 + $0x20] sm:$0xff]
        %v823 = vld [vmem:[#allocation4 + $0x28] sm:$0xff]
        %v824 = vld [vmem:[#allocation4 + $0x30] sm:$0xff]
        %v825 = vld [vmem:[#allocation4 + $0x38] sm:$0xff]
        %v826 = vld [vmem:[#allocation4 + $0x40] sm:$0xff]
        %v827 = vld [vmem:[#allocation4 + $0x48] sm:$0xff]
        %v828 = vld [vmem:[#allocation4 + $0x50] sm:$0xff]
        %v829 = vld [vmem:[#allocation4 + $0x58] sm:$0xff]
        %v830 = vld [vmem:[#allocation4 + $0x60] sm:$0xff]
        %v831 = vld [vmem:[#allocation4 + $0x68] sm:$0xff]
        %v832 = vld [vmem:[#allocation4 + $0x70] sm:$0xff]
        %v833 = vld [vmem:[#allocation4 + $0x78] sm:$0xff]
        %v834 = vsel %vm802, %v599, 0.0
        %v835 = vsel %vm803, %v600, 0.0
        %v836 = vsel %vm804, %v601, 0.0
        %v837 = vsel %vm805, %v602, 0.0
        %v838 = vsel %vm806, %v603, 0.0
        %v839 = vsel %vm807, %v604, 0.0
        %v840 = vsel %vm808, %v605, 0.0
        %v841 = vsel %vm809, %v606, 0.0
        %v842 = vsel %vm810, %v607, 0.0
        %v843 = vsel %vm811, %v608, 0.0
        %v844 = vsel %vm812, %v609, 0.0
        %v845 = vsel %vm813, %v610, 0.0
        %v846 = vsel %vm814, %v611, 0.0
        %v847 = vsel %vm815, %v612, 0.0
        %v848 = vsel %vm816, %v613, 0.0
        %v849 = vsel %vm817, %v614, 0.0
        %850 = vadd.xlane.f32.xlu0 %v834
        %v851 = vpop.xlane.xlu0 %850
        %852 = vadd.xlane.f32.xlu0 %v835
        %v853 = vpop.xlane.xlu0 %852
        %854 = vadd.xlane.f32.xlu0 %v836
        %v855 = vpop.xlane.xlu0 %854
        %856 = vadd.xlane.f32.xlu0 %v837
        %v857 = vpop.xlane.xlu0 %856
        %858 = vadd.xlane.f32.xlu0 %v838
        %v859 = vpop.xlane.xlu0 %858
        %860 = vadd.xlane.f32.xlu0 %v839
        %v861 = vpop.xlane.xlu0 %860
        %862 = vadd.xlane.f32.xlu0 %v840
        %v863 = vpop.xlane.xlu0 %862
        %864 = vadd.xlane.f32.xlu0 %v841
        %v865 = vpop.xlane.xlu0 %864
        %866 = vadd.xlane.f32.xlu0 %v842
        %v867 = vpop.xlane.xlu0 %866
        %868 = vadd.xlane.f32.xlu0 %v843
        %v869 = vpop.xlane.xlu0 %868
        %870 = vadd.xlane.f32.xlu0 %v844
        %v871 = vpop.xlane.xlu0 %870
        %872 = vadd.xlane.f32.xlu0 %v845
        %v873 = vpop.xlane.xlu0 %872
        %874 = vadd.xlane.f32.xlu0 %v846
        %v875 = vpop.xlane.xlu0 %874
        %876 = vadd.xlane.f32.xlu0 %v847
        %v877 = vpop.xlane.xlu0 %876
        %878 = vadd.xlane.f32.xlu0 %v848
        %v879 = vpop.xlane.xlu0 %878
        %880 = vadd.xlane.f32.xlu0 %v849
        %v881 = vpop.xlane.xlu0 %880
        %v882 = vadd.f32 %v818, %v851
        %v883 = vadd.f32 %v819, %v853
        %v884 = vadd.f32 %v820, %v855
        %v885 = vadd.f32 %v821, %v857
        %v886 = vadd.f32 %v822, %v859
        %v887 = vadd.f32 %v823, %v861
        %v888 = vadd.f32 %v824, %v863
        %v889 = vadd.f32 %v825, %v865
        %v890 = vadd.f32 %v826, %v867
        %v891 = vadd.f32 %v827, %v869
        %v892 = vadd.f32 %v828, %v871
        %v893 = vadd.f32 %v829, %v873
        %v894 = vadd.f32 %v830, %v875
        %v895 = vadd.f32 %v831, %v877
        %v896 = vadd.f32 %v832, %v879
        %v897 = vadd.f32 %v833, %v881
        %vm898 = vcmask 7168
        %899 = vst.msk [vmem:[#allocation4] sm:$0xff] %vm898, %v882
        %900 = vst.msk [vmem:[#allocation4 + $0x8] sm:$0xff] %vm898, %v883
        %901 = vst.msk [vmem:[#allocation4 + $0x10] sm:$0xff] %vm898, %v884
        %902 = vst.msk [vmem:[#allocation4 + $0x18] sm:$0xff] %vm898, %v885
        %903 = vst.msk [vmem:[#allocation4 + $0x20] sm:$0xff] %vm898, %v886
        %904 = vst.msk [vmem:[#allocation4 + $0x28] sm:$0xff] %vm898, %v887
        %905 = vst.msk [vmem:[#allocation4 + $0x30] sm:$0xff] %vm898, %v888
        %906 = vst.msk [vmem:[#allocation4 + $0x38] sm:$0xff] %vm898, %v889
        %907 = vst.msk [vmem:[#allocation4 + $0x40] sm:$0xff] %vm898, %v890
        %908 = vst.msk [vmem:[#allocation4 + $0x48] sm:$0xff] %vm898, %v891
        %909 = vst.msk [vmem:[#allocation4 + $0x50] sm:$0xff] %vm898, %v892
        %910 = vst.msk [vmem:[#allocation4 + $0x58] sm:$0xff] %vm898, %v893
        %911 = vst.msk [vmem:[#allocation4 + $0x60] sm:$0xff] %vm898, %v894
        %912 = vst.msk [vmem:[#allocation4 + $0x68] sm:$0xff] %vm898, %v895
        %913 = vst.msk [vmem:[#allocation4 + $0x70] sm:$0xff] %vm898, %v896
        %914 = vst.msk [vmem:[#allocation4 + $0x78] sm:$0xff] %vm898, %v897
        %v915 = vld [vmem:[#allocation2] sm:$0xff]
        %v916 = vld [vmem:[#allocation2 + $0x8] sm:$0xff]
        %v917 = vld [vmem:[#allocation2 + $0x10] sm:$0xff]
        %v918 = vld [vmem:[#allocation2 + $0x18] sm:$0xff]
        %v919 = vld [vmem:[#allocation2 + $0x20] sm:$0xff]
        %v920 = vld [vmem:[#allocation2 + $0x28] sm:$0xff]
        %v921 = vld [vmem:[#allocation2 + $0x30] sm:$0xff]
        %v922 = vld [vmem:[#allocation2 + $0x38] sm:$0xff]
        %v923 = vld [vmem:[#allocation2 + $0x40] sm:$0xff]
        %v924 = vld [vmem:[#allocation2 + $0x48] sm:$0xff]
        %v925 = vld [vmem:[#allocation2 + $0x50] sm:$0xff]
        %v926 = vld [vmem:[#allocation2 + $0x58] sm:$0xff]
        %v927 = vld [vmem:[#allocation2 + $0x60] sm:$0xff]
        %v928 = vld [vmem:[#allocation2 + $0x68] sm:$0xff]
        %v929 = vld [vmem:[#allocation2 + $0x70] sm:$0xff]
        %v930 = vld [vmem:[#allocation2 + $0x78] sm:$0xff]
        %931 = vmax.xlane.f32.xlu0 %v786
        %v932 = vpop.xlane.xlu0 %931
        %933 = vmax.xlane.f32.xlu0 %v787
        %v934 = vpop.xlane.xlu0 %933
        %935 = vmax.xlane.f32.xlu0 %v788
        %v936 = vpop.xlane.xlu0 %935
        %937 = vmax.xlane.f32.xlu0 %v789
        %v938 = vpop.xlane.xlu0 %937
        %939 = vmax.xlane.f32.xlu0 %v790
        %v940 = vpop.xlane.xlu0 %939
        %941 = vmax.xlane.f32.xlu0 %v791
        %v942 = vpop.xlane.xlu0 %941
        %943 = vmax.xlane.f32.xlu0 %v792
        %v944 = vpop.xlane.xlu0 %943
        %945 = vmax.xlane.f32.xlu0 %v793
        %v946 = vpop.xlane.xlu0 %945
        %947 = vmax.xlane.f32.xlu0 %v794
        %v948 = vpop.xlane.xlu0 %947
        %949 = vmax.xlane.f32.xlu0 %v795
        %v950 = vpop.xlane.xlu0 %949
        %951 = vmax.xlane.f32.xlu0 %v796
        %v952 = vpop.xlane.xlu0 %951
        %953 = vmax.xlane.f32.xlu0 %v797
        %v954 = vpop.xlane.xlu0 %953
        %955 = vmax.xlane.f32.xlu0 %v798
        %v956 = vpop.xlane.xlu0 %955
        %957 = vmax.xlane.f32.xlu0 %v799
        %v958 = vpop.xlane.xlu0 %957
        %959 = vmax.xlane.f32.xlu0 %v800
        %v960 = vpop.xlane.xlu0 %959
        %961 = vmax.xlane.f32.xlu0 %v801
        %v962 = vpop.xlane.xlu0 %961
        %v963 = vmax.f32 %v915, %v932
        %v964 = vmax.f32 %v916, %v934
        %v965 = vmax.f32 %v917, %v936
        %v966 = vmax.f32 %v918, %v938
        %v967 = vmax.f32 %v919, %v940
        %v968 = vmax.f32 %v920, %v942
        %v969 = vmax.f32 %v921, %v944
        %v970 = vmax.f32 %v922, %v946
        %v971 = vmax.f32 %v923, %v948
        %v972 = vmax.f32 %v924, %v950
        %v973 = vmax.f32 %v925, %v952
        %v974 = vmax.f32 %v926, %v954
        %v975 = vmax.f32 %v927, %v956
        %v976 = vmax.f32 %v928, %v958
        %v977 = vmax.f32 %v929, %v960
        %v978 = vmax.f32 %v930, %v962
        %v979 = vsub.f32 %v915, %v963
        %v980 = vsub.f32 %v916, %v964
        %v981 = vsub.f32 %v917, %v965
        %v982 = vsub.f32 %v918, %v966
        %v983 = vsub.f32 %v919, %v967
        %v984 = vsub.f32 %v920, %v968
        %v985 = vsub.f32 %v921, %v969
        %v986 = vsub.f32 %v922, %v970
        %v987 = vsub.f32 %v923, %v971
        %v988 = vsub.f32 %v924, %v972
        %v989 = vsub.f32 %v925, %v973
        %v990 = vsub.f32 %v926, %v974
        %v991 = vsub.f32 %v927, %v975
        %v992 = vsub.f32 %v928, %v976
        %v993 = vsub.f32 %v929, %v977
        %v994 = vsub.f32 %v930, %v978
        %v995 = vmul.f32 %v979, 1.442695
        %v996 = vpow.pop %v995
        %v997 = vmul.f32 %v980, 1.442695
        %v998 = vpow.pop %v997
        %v999 = vmul.f32 %v981, 1.442695
        %v1000 = vpow.pop %v999
        %v1001 = vmul.f32 %v982, 1.442695
        %v1002 = vpow.pop %v1001
        %v1003 = vmul.f32 %v983, 1.442695
        %v1004 = vpow.pop %v1003
        %v1005 = vmul.f32 %v984, 1.442695
        %v1006 = vpow.pop %v1005
        %v1007 = vmul.f32 %v985, 1.442695
        %v1008 = vpow.pop %v1007
        %v1009 = vmul.f32 %v986, 1.442695
        %v1010 = vpow.pop %v1009
        %v1011 = vmul.f32 %v987, 1.442695
        %v1012 = vpow.pop %v1011
        %v1013 = vmul.f32 %v988, 1.442695
        %v1014 = vpow.pop %v1013
        %v1015 = vmul.f32 %v989, 1.442695
        %v1016 = vpow.pop %v1015
        %v1017 = vmul.f32 %v990, 1.442695
        %v1018 = vpow.pop %v1017
        %v1019 = vmul.f32 %v991, 1.442695
        %v1020 = vpow.pop %v1019
        %v1021 = vmul.f32 %v992, 1.442695
        %v1022 = vpow.pop %v1021
        %v1023 = vmul.f32 %v993, 1.442695
        %v1024 = vpow.pop %v1023
        %v1025 = vmul.f32 %v994, 1.442695
        %v1026 = vpow.pop %v1025
        %1028 = vset.pattern.permute.xlu0 0
        %1029 = vperm.xlu0 %1028, %v963
        %v1030 = vpop.permute.xlu0 %1029
        %1033 = vset.pattern.permute.xlu0 0
        %1034 = vperm.xlu0 %1033, %v964
        %v1035 = vpop.permute.xlu0 %1034
        %1038 = vset.pattern.permute.xlu0 0
        %1039 = vperm.xlu0 %1038, %v965
        %v1040 = vpop.permute.xlu0 %1039
        %1043 = vset.pattern.permute.xlu0 0
        %1044 = vperm.xlu0 %1043, %v966
        %v1045 = vpop.permute.xlu0 %1044
        %1048 = vset.pattern.permute.xlu0 0
        %1049 = vperm.xlu0 %1048, %v967
        %v1050 = vpop.permute.xlu0 %1049
        %1053 = vset.pattern.permute.xlu0 0
        %1054 = vperm.xlu0 %1053, %v968
        %v1055 = vpop.permute.xlu0 %1054
        %1058 = vset.pattern.permute.xlu0 0
        %1059 = vperm.xlu0 %1058, %v969
        %v1060 = vpop.permute.xlu0 %1059
        %1063 = vset.pattern.permute.xlu0 0
        %1064 = vperm.xlu0 %1063, %v970
        %v1065 = vpop.permute.xlu0 %1064
        %1068 = vset.pattern.permute.xlu0 0
        %1069 = vperm.xlu0 %1068, %v971
        %v1070 = vpop.permute.xlu0 %1069
        %1073 = vset.pattern.permute.xlu0 0
        %1074 = vperm.xlu0 %1073, %v972
        %v1075 = vpop.permute.xlu0 %1074
        %1078 = vset.pattern.permute.xlu0 0
        %1079 = vperm.xlu0 %1078, %v973
        %v1080 = vpop.permute.xlu0 %1079
        %1083 = vset.pattern.permute.xlu0 0
        %1084 = vperm.xlu0 %1083, %v974
        %v1085 = vpop.permute.xlu0 %1084
        %1088 = vset.pattern.permute.xlu0 0
        %1089 = vperm.xlu0 %1088, %v975
        %v1090 = vpop.permute.xlu0 %1089
        %1093 = vset.pattern.permute.xlu0 0
        %1094 = vperm.xlu0 %1093, %v976
        %v1095 = vpop.permute.xlu0 %1094
        %1098 = vset.pattern.permute.xlu0 0
        %1099 = vperm.xlu0 %1098, %v977
        %v1100 = vpop.permute.xlu0 %1099
        %1103 = vset.pattern.permute.xlu0 0
        %1104 = vperm.xlu0 %1103, %v978
        %v1105 = vpop.permute.xlu0 %1104
        %v1107 = vsub.f32 %v786, %v1030
        %v1108 = vsub.f32 %v787, %v1035
        %v1109 = vsub.f32 %v788, %v1040
        %v1110 = vsub.f32 %v789, %v1045
        %v1111 = vsub.f32 %v790, %v1050
        %v1112 = vsub.f32 %v791, %v1055
        %v1113 = vsub.f32 %v792, %v1060
        %v1114 = vsub.f32 %v793, %v1065
        %v1115 = vsub.f32 %v794, %v1070
        %v1116 = vsub.f32 %v795, %v1075
        %v1117 = vsub.f32 %v796, %v1080
        %v1118 = vsub.f32 %v797, %v1085
        %v1119 = vsub.f32 %v798, %v1090
        %v1120 = vsub.f32 %v799, %v1095
        %v1121 = vsub.f32 %v800, %v1100
        %v1122 = vsub.f32 %v801, %v1105
        %v1123 = vmul.f32 %v1107, 1.442695
        %v1124 = vpow.pop %v1123
        %v1125 = vmul.f32 %v1108, 1.442695
        %v1126 = vpow.pop %v1125
        %v1127 = vmul.f32 %v1109, 1.442695
        %v1128 = vpow.pop %v1127
        %v1129 = vmul.f32 %v1110, 1.442695
        %v1130 = vpow.pop %v1129
        %v1131 = vmul.f32 %v1111, 1.442695
        %v1132 = vpow.pop %v1131
        %v1133 = vmul.f32 %v1112, 1.442695
        %v1134 = vpow.pop %v1133
        %v1135 = vmul.f32 %v1113, 1.442695
        %v1136 = vpow.pop %v1135
        %v1137 = vmul.f32 %v1114, 1.442695
        %v1138 = vpow.pop %v1137
        %v1139 = vmul.f32 %v1115, 1.442695
        %v1140 = vpow.pop %v1139
        %v1141 = vmul.f32 %v1116, 1.442695
        %v1142 = vpow.pop %v1141
        %v1143 = vmul.f32 %v1117, 1.442695
        %v1144 = vpow.pop %v1143
        %v1145 = vmul.f32 %v1118, 1.442695
        %v1146 = vpow.pop %v1145
        %v1147 = vmul.f32 %v1119, 1.442695
        %v1148 = vpow.pop %v1147
        %v1149 = vmul.f32 %v1120, 1.442695
        %v1150 = vpow.pop %v1149
        %v1151 = vmul.f32 %v1121, 1.442695
        %v1152 = vpow.pop %v1151
        %v1153 = vmul.f32 %v1122, 1.442695
        %v1154 = vpow.pop %v1153
        %1155 = vadd.xlane.f32.xlu0 %v1124
        %v1156 = vpop.xlane.xlu0 %1155
        %1157 = vadd.xlane.f32.xlu0 %v1126
        %v1158 = vpop.xlane.xlu0 %1157
        %1159 = vadd.xlane.f32.xlu0 %v1128
        %v1160 = vpop.xlane.xlu0 %1159
        %1161 = vadd.xlane.f32.xlu0 %v1130
        %v1162 = vpop.xlane.xlu0 %1161
        %1163 = vadd.xlane.f32.xlu0 %v1132
        %v1164 = vpop.xlane.xlu0 %1163
        %1165 = vadd.xlane.f32.xlu0 %v1134
        %v1166 = vpop.xlane.xlu0 %1165
        %1167 = vadd.xlane.f32.xlu0 %v1136
        %v1168 = vpop.xlane.xlu0 %1167
        %1169 = vadd.xlane.f32.xlu0 %v1138
        %v1170 = vpop.xlane.xlu0 %1169
        %1171 = vadd.xlane.f32.xlu0 %v1140
        %v1172 = vpop.xlane.xlu0 %1171
        %1173 = vadd.xlane.f32.xlu0 %v1142
        %v1174 = vpop.xlane.xlu0 %1173
        %1175 = vadd.xlane.f32.xlu0 %v1144
        %v1176 = vpop.xlane.xlu0 %1175
        %1177 = vadd.xlane.f32.xlu0 %v1146
        %v1178 = vpop.xlane.xlu0 %1177
        %1179 = vadd.xlane.f32.xlu0 %v1148
        %v1180 = vpop.xlane.xlu0 %1179
        %1181 = vadd.xlane.f32.xlu0 %v1150
        %v1182 = vpop.xlane.xlu0 %1181
        %1183 = vadd.xlane.f32.xlu0 %v1152
        %v1184 = vpop.xlane.xlu0 %1183
        %1185 = vadd.xlane.f32.xlu0 %v1154
        %v1186 = vpop.xlane.xlu0 %1185
        %v1187 = vld [vmem:[#allocation3] sm:$0xff]
        %v1188 = vld [vmem:[#allocation3 + $0x8] sm:$0xff]
        %v1189 = vld [vmem:[#allocation3 + $0x10] sm:$0xff]
        %v1190 = vld [vmem:[#allocation3 + $0x18] sm:$0xff]
        %v1191 = vld [vmem:[#allocation3 + $0x20] sm:$0xff]
        %v1192 = vld [vmem:[#allocation3 + $0x28] sm:$0xff]
        %v1193 = vld [vmem:[#allocation3 + $0x30] sm:$0xff]
        %v1194 = vld [vmem:[#allocation3 + $0x38] sm:$0xff]
        %v1195 = vld [vmem:[#allocation3 + $0x40] sm:$0xff]
        %v1196 = vld [vmem:[#allocation3 + $0x48] sm:$0xff]
        %v1197 = vld [vmem:[#allocation3 + $0x50] sm:$0xff]
        %v1198 = vld [vmem:[#allocation3 + $0x58] sm:$0xff]
        %v1199 = vld [vmem:[#allocation3 + $0x60] sm:$0xff]
        %v1200 = vld [vmem:[#allocation3 + $0x68] sm:$0xff]
        %v1201 = vld [vmem:[#allocation3 + $0x70] sm:$0xff]
        %v1202 = vld [vmem:[#allocation3 + $0x78] sm:$0xff]
        %v1203 = vmul.f32 %v996, %v1187
        %v1204 = vmul.f32 %v998, %v1188
        %v1205 = vmul.f32 %v1000, %v1189
        %v1206 = vmul.f32 %v1002, %v1190
        %v1207 = vmul.f32 %v1004, %v1191
        %v1208 = vmul.f32 %v1006, %v1192
        %v1209 = vmul.f32 %v1008, %v1193
        %v1210 = vmul.f32 %v1010, %v1194
        %v1211 = vmul.f32 %v1012, %v1195
        %v1212 = vmul.f32 %v1014, %v1196
        %v1213 = vmul.f32 %v1016, %v1197
        %v1214 = vmul.f32 %v1018, %v1198
        %v1215 = vmul.f32 %v1020, %v1199
        %v1216 = vmul.f32 %v1022, %v1200
        %v1217 = vmul.f32 %v1024, %v1201
        %v1218 = vmul.f32 %v1026, %v1202
        %v1219 = vadd.f32 %v1203, %v1156
        %v1220 = vadd.f32 %v1204, %v1158
        %v1221 = vadd.f32 %v1205, %v1160
        %v1222 = vadd.f32 %v1206, %v1162
        %v1223 = vadd.f32 %v1207, %v1164
        %v1224 = vadd.f32 %v1208, %v1166
        %v1225 = vadd.f32 %v1209, %v1168
        %v1226 = vadd.f32 %v1210, %v1170
        %v1227 = vadd.f32 %v1211, %v1172
        %v1228 = vadd.f32 %v1212, %v1174
        %v1229 = vadd.f32 %v1213, %v1176
        %v1230 = vadd.f32 %v1214, %v1178
        %v1231 = vadd.f32 %v1215, %v1180
        %v1232 = vadd.f32 %v1216, %v1182
        %v1233 = vadd.f32 %v1217, %v1184
        %v1234 = vadd.f32 %v1218, %v1186
        %1235 = vst.msk [vmem:[#allocation3] sm:$0xff] %vm898, %v1219
        %1236 = vst.msk [vmem:[#allocation3 + $0x8] sm:$0xff] %vm898, %v1220
        %1237 = vst.msk [vmem:[#allocation3 + $0x10] sm:$0xff] %vm898, %v1221
        %1238 = vst.msk [vmem:[#allocation3 + $0x18] sm:$0xff] %vm898, %v1222
        %1239 = vst.msk [vmem:[#allocation3 + $0x20] sm:$0xff] %vm898, %v1223
        %1240 = vst.msk [vmem:[#allocation3 + $0x28] sm:$0xff] %vm898, %v1224
        %1241 = vst.msk [vmem:[#allocation3 + $0x30] sm:$0xff] %vm898, %v1225
        %1242 = vst.msk [vmem:[#allocation3 + $0x38] sm:$0xff] %vm898, %v1226
        %1243 = vst.msk [vmem:[#allocation3 + $0x40] sm:$0xff] %vm898, %v1227
        %1244 = vst.msk [vmem:[#allocation3 + $0x48] sm:$0xff] %vm898, %v1228
        %1245 = vst.msk [vmem:[#allocation3 + $0x50] sm:$0xff] %vm898, %v1229
        %1246 = vst.msk [vmem:[#allocation3 + $0x58] sm:$0xff] %vm898, %v1230
        %1247 = vst.msk [vmem:[#allocation3 + $0x60] sm:$0xff] %vm898, %v1231
        %1248 = vst.msk [vmem:[#allocation3 + $0x68] sm:$0xff] %vm898, %v1232
        %1249 = vst.msk [vmem:[#allocation3 + $0x70] sm:$0xff] %vm898, %v1233
        %1250 = vst.msk [vmem:[#allocation3 + $0x78] sm:$0xff] %vm898, %v1234
        %1251 = vst.msk [vmem:[#allocation2] sm:$0xff] %vm898, %v963
        %1252 = vst.msk [vmem:[#allocation2 + $0x8] sm:$0xff] %vm898, %v964
        %1253 = vst.msk [vmem:[#allocation2 + $0x10] sm:$0xff] %vm898, %v965
        %1254 = vst.msk [vmem:[#allocation2 + $0x18] sm:$0xff] %vm898, %v966
        %1255 = vst.msk [vmem:[#allocation2 + $0x20] sm:$0xff] %vm898, %v967
        %1256 = vst.msk [vmem:[#allocation2 + $0x28] sm:$0xff] %vm898, %v968
        %1257 = vst.msk [vmem:[#allocation2 + $0x30] sm:$0xff] %vm898, %v969
        %1258 = vst.msk [vmem:[#allocation2 + $0x38] sm:$0xff] %vm898, %v970
        %1259 = vst.msk [vmem:[#allocation2 + $0x40] sm:$0xff] %vm898, %v971
        %1260 = vst.msk [vmem:[#allocation2 + $0x48] sm:$0xff] %vm898, %v972
        %1261 = vst.msk [vmem:[#allocation2 + $0x50] sm:$0xff] %vm898, %v973
        %1262 = vst.msk [vmem:[#allocation2 + $0x58] sm:$0xff] %vm898, %v974
        %1263 = vst.msk [vmem:[#allocation2 + $0x60] sm:$0xff] %vm898, %v975
        %1264 = vst.msk [vmem:[#allocation2 + $0x68] sm:$0xff] %vm898, %v976
        %1265 = vst.msk [vmem:[#allocation2 + $0x70] sm:$0xff] %vm898, %v977
        %1266 = vst.msk [vmem:[#allocation2 + $0x78] sm:$0xff] %vm898, %v978
      $region48: #{tpu_custom_call.1} parent=39 // pred_fallthru
        _
      %p1267 = pneg %p709
      // Predicated region
      $region49: #{tpu_custom_call.1} parent=39 // pred_check
        _
      $region50: #{tpu_custom_call.1} parent=39 // pred_check_branch
        %1269 = sbr.rel (%p709) target = $region52
      $region51: #{tpu_custom_call.1} parent=39 // pred_region
        %v1270 = vld [vmem:[#allocation4] sm:$0xff]
        %v1271 = vld [vmem:[#allocation4 + $0x8] sm:$0xff]
        %v1272 = vld [vmem:[#allocation4 + $0x10] sm:$0xff]
        %v1273 = vld [vmem:[#allocation4 + $0x18] sm:$0xff]
        %v1274 = vld [vmem:[#allocation4 + $0x20] sm:$0xff]
        %v1275 = vld [vmem:[#allocation4 + $0x28] sm:$0xff]
        %v1276 = vld [vmem:[#allocation4 + $0x30] sm:$0xff]
        %v1277 = vld [vmem:[#allocation4 + $0x38] sm:$0xff]
        %v1278 = vld [vmem:[#allocation4 + $0x40] sm:$0xff]
        %v1279 = vld [vmem:[#allocation4 + $0x48] sm:$0xff]
        %v1280 = vld [vmem:[#allocation4 + $0x50] sm:$0xff]
        %v1281 = vld [vmem:[#allocation4 + $0x58] sm:$0xff]
        %v1282 = vld [vmem:[#allocation4 + $0x60] sm:$0xff]
        %v1283 = vld [vmem:[#allocation4 + $0x68] sm:$0xff]
        %v1284 = vld [vmem:[#allocation4 + $0x70] sm:$0xff]
        %v1285 = vld [vmem:[#allocation4 + $0x78] sm:$0xff]
        %v1286 = vsel %vm684, %v599, 0.0
        %v1287 = vsel %vm685, %v600, 0.0
        %v1288 = vsel %vm686, %v601, 0.0
        %v1289 = vsel %vm687, %v602, 0.0
        %v1290 = vsel %vm688, %v603, 0.0
        %v1291 = vsel %vm689, %v604, 0.0
        %v1292 = vsel %vm690, %v605, 0.0
        %v1293 = vsel %vm691, %v606, 0.0
        %v1294 = vsel %vm692, %v607, 0.0
        %v1295 = vsel %vm693, %v608, 0.0
        %v1296 = vsel %vm694, %v609, 0.0
        %v1297 = vsel %vm695, %v610, 0.0
        %v1298 = vsel %vm696, %v611, 0.0
        %v1299 = vsel %vm697, %v612, 0.0
        %v1300 = vsel %vm698, %v613, 0.0
        %v1301 = vsel %vm699, %v614, 0.0
        %1302 = vadd.xlane.f32.xlu0 %v1286
        %v1303 = vpop.xlane.xlu0 %1302
        %1304 = vadd.xlane.f32.xlu0 %v1287
        %v1305 = vpop.xlane.xlu0 %1304
        %1306 = vadd.xlane.f32.xlu0 %v1288
        %v1307 = vpop.xlane.xlu0 %1306
        %1308 = vadd.xlane.f32.xlu0 %v1289
        %v1309 = vpop.xlane.xlu0 %1308
        %1310 = vadd.xlane.f32.xlu0 %v1290
        %v1311 = vpop.xlane.xlu0 %1310
        %1312 = vadd.xlane.f32.xlu0 %v1291
        %v1313 = vpop.xlane.xlu0 %1312
        %1314 = vadd.xlane.f32.xlu0 %v1292
        %v1315 = vpop.xlane.xlu0 %1314
        %1316 = vadd.xlane.f32.xlu0 %v1293
        %v1317 = vpop.xlane.xlu0 %1316
        %1318 = vadd.xlane.f32.xlu0 %v1294
        %v1319 = vpop.xlane.xlu0 %1318
        %1320 = vadd.xlane.f32.xlu0 %v1295
        %v1321 = vpop.xlane.xlu0 %1320
        %1322 = vadd.xlane.f32.xlu0 %v1296
        %v1323 = vpop.xlane.xlu0 %1322
        %1324 = vadd.xlane.f32.xlu0 %v1297
        %v1325 = vpop.xlane.xlu0 %1324
        %1326 = vadd.xlane.f32.xlu0 %v1298
        %v1327 = vpop.xlane.xlu0 %1326
        %1328 = vadd.xlane.f32.xlu0 %v1299
        %v1329 = vpop.xlane.xlu0 %1328
        %1330 = vadd.xlane.f32.xlu0 %v1300
        %v1331 = vpop.xlane.xlu0 %1330
        %1332 = vadd.xlane.f32.xlu0 %v1301
        %v1333 = vpop.xlane.xlu0 %1332
        %v1334 = vadd.f32 %v1270, %v1303
        %v1335 = vadd.f32 %v1271, %v1305
        %v1336 = vadd.f32 %v1272, %v1307
        %v1337 = vadd.f32 %v1273, %v1309
        %v1338 = vadd.f32 %v1274, %v1311
        %v1339 = vadd.f32 %v1275, %v1313
        %v1340 = vadd.f32 %v1276, %v1315
        %v1341 = vadd.f32 %v1277, %v1317
        %v1342 = vadd.f32 %v1278, %v1319
        %v1343 = vadd.f32 %v1279, %v1321
        %v1344 = vadd.f32 %v1280, %v1323
        %v1345 = vadd.f32 %v1281, %v1325
        %v1346 = vadd.f32 %v1282, %v1327
        %v1347 = vadd.f32 %v1283, %v1329
        %v1348 = vadd.f32 %v1284, %v1331
        %v1349 = vadd.f32 %v1285, %v1333
        %vm1350 = vcmask 7168
        %1351 = vst.msk [vmem:[#allocation4] sm:$0xff] %vm1350, %v1334
        %1352 = vst.msk [vmem:[#allocation4 + $0x8] sm:$0xff] %vm1350, %v1335
        %1353 = vst.msk [vmem:[#allocation4 + $0x10] sm:$0xff] %vm1350, %v1336
        %1354 = vst.msk [vmem:[#allocation4 + $0x18] sm:$0xff] %vm1350, %v1337
        %1355 = vst.msk [vmem:[#allocation4 + $0x20] sm:$0xff] %vm1350, %v1338
        %1356 = vst.msk [vmem:[#allocation4 + $0x28] sm:$0xff] %vm1350, %v1339
        %1357 = vst.msk [vmem:[#allocation4 + $0x30] sm:$0xff] %vm1350, %v1340
        %1358 = vst.msk [vmem:[#allocation4 + $0x38] sm:$0xff] %vm1350, %v1341
        %1359 = vst.msk [vmem:[#allocation4 + $0x40] sm:$0xff] %vm1350, %v1342
        %1360 = vst.msk [vmem:[#allocation4 + $0x48] sm:$0xff] %vm1350, %v1343
        %1361 = vst.msk [vmem:[#allocation4 + $0x50] sm:$0xff] %vm1350, %v1344
        %1362 = vst.msk [vmem:[#allocation4 + $0x58] sm:$0xff] %vm1350, %v1345
        %1363 = vst.msk [vmem:[#allocation4 + $0x60] sm:$0xff] %vm1350, %v1346
        %1364 = vst.msk [vmem:[#allocation4 + $0x68] sm:$0xff] %vm1350, %v1347
        %1365 = vst.msk [vmem:[#allocation4 + $0x70] sm:$0xff] %vm1350, %v1348
        %1366 = vst.msk [vmem:[#allocation4 + $0x78] sm:$0xff] %vm1350, %v1349
        %v1367 = vld [vmem:[#allocation2] sm:$0xff]
        %v1368 = vld [vmem:[#allocation2 + $0x8] sm:$0xff]
        %v1369 = vld [vmem:[#allocation2 + $0x10] sm:$0xff]
        %v1370 = vld [vmem:[#allocation2 + $0x18] sm:$0xff]
        %v1371 = vld [vmem:[#allocation2 + $0x20] sm:$0xff]
        %v1372 = vld [vmem:[#allocation2 + $0x28] sm:$0xff]
        %v1373 = vld [vmem:[#allocation2 + $0x30] sm:$0xff]
        %v1374 = vld [vmem:[#allocation2 + $0x38] sm:$0xff]
        %v1375 = vld [vmem:[#allocation2 + $0x40] sm:$0xff]
        %v1376 = vld [vmem:[#allocation2 + $0x48] sm:$0xff]
        %v1377 = vld [vmem:[#allocation2 + $0x50] sm:$0xff]
        %v1378 = vld [vmem:[#allocation2 + $0x58] sm:$0xff]
        %v1379 = vld [vmem:[#allocation2 + $0x60] sm:$0xff]
        %v1380 = vld [vmem:[#allocation2 + $0x68] sm:$0xff]
        %v1381 = vld [vmem:[#allocation2 + $0x70] sm:$0xff]
        %v1382 = vld [vmem:[#allocation2 + $0x78] sm:$0xff]
        %1383 = vmax.xlane.f32.xlu0 %v599
        %v1384 = vpop.xlane.xlu0 %1383
        %1385 = vmax.xlane.f32.xlu0 %v600
        %v1386 = vpop.xlane.xlu0 %1385
        %1387 = vmax.xlane.f32.xlu0 %v601
        %v1388 = vpop.xlane.xlu0 %1387
        %1389 = vmax.xlane.f32.xlu0 %v602
        %v1390 = vpop.xlane.xlu0 %1389
        %1391 = vmax.xlane.f32.xlu0 %v603
        %v1392 = vpop.xlane.xlu0 %1391
        %1393 = vmax.xlane.f32.xlu0 %v604
        %v1394 = vpop.xlane.xlu0 %1393
        %1395 = vmax.xlane.f32.xlu0 %v605
        %v1396 = vpop.xlane.xlu0 %1395
        %1397 = vmax.xlane.f32.xlu0 %v606
        %v1398 = vpop.xlane.xlu0 %1397
        %1399 = vmax.xlane.f32.xlu0 %v607
        %v1400 = vpop.xlane.xlu0 %1399
        %1401 = vmax.xlane.f32.xlu0 %v608
        %v1402 = vpop.xlane.xlu0 %1401
        %1403 = vmax.xlane.f32.xlu0 %v609
        %v1404 = vpop.xlane.xlu0 %1403
        %1405 = vmax.xlane.f32.xlu0 %v610
        %v1406 = vpop.xlane.xlu0 %1405
        %1407 = vmax.xlane.f32.xlu0 %v611
        %v1408 = vpop.xlane.xlu0 %1407
        %1409 = vmax.xlane.f32.xlu0 %v612
        %v1410 = vpop.xlane.xlu0 %1409
        %1411 = vmax.xlane.f32.xlu0 %v613
        %v1412 = vpop.xlane.xlu0 %1411
        %1413 = vmax.xlane.f32.xlu0 %v614
        %v1414 = vpop.xlane.xlu0 %1413
        %v1415 = vmax.f32 %v1367, %v1384
        %v1416 = vmax.f32 %v1368, %v1386
        %v1417 = vmax.f32 %v1369, %v1388
        %v1418 = vmax.f32 %v1370, %v1390
        %v1419 = vmax.f32 %v1371, %v1392
        %v1420 = vmax.f32 %v1372, %v1394
        %v1421 = vmax.f32 %v1373, %v1396
        %v1422 = vmax.f32 %v1374, %v1398
        %v1423 = vmax.f32 %v1375, %v1400
        %v1424 = vmax.f32 %v1376, %v1402
        %v1425 = vmax.f32 %v1377, %v1404
        %v1426 = vmax.f32 %v1378, %v1406
        %v1427 = vmax.f32 %v1379, %v1408
        %v1428 = vmax.f32 %v1380, %v1410
        %v1429 = vmax.f32 %v1381, %v1412
        %v1430 = vmax.f32 %v1382, %v1414
        %v1431 = vsub.f32 %v1367, %v1415
        %v1432 = vsub.f32 %v1368, %v1416
        %v1433 = vsub.f32 %v1369, %v1417
        %v1434 = vsub.f32 %v1370, %v1418
        %v1435 = vsub.f32 %v1371, %v1419
        %v1436 = vsub.f32 %v1372, %v1420
        %v1437 = vsub.f32 %v1373, %v1421
        %v1438 = vsub.f32 %v1374, %v1422
        %v1439 = vsub.f32 %v1375, %v1423
        %v1440 = vsub.f32 %v1376, %v1424
        %v1441 = vsub.f32 %v1377, %v1425
        %v1442 = vsub.f32 %v1378, %v1426
        %v1443 = vsub.f32 %v1379, %v1427
        %v1444 = vsub.f32 %v1380, %v1428
        %v1445 = vsub.f32 %v1381, %v1429
        %v1446 = vsub.f32 %v1382, %v1430
        %v1447 = vmul.f32 %v1431, 1.442695
        %v1448 = vpow.pop %v1447
        %v1449 = vmul.f32 %v1432, 1.442695
        %v1450 = vpow.pop %v1449
        %v1451 = vmul.f32 %v1433, 1.442695
        %v1452 = vpow.pop %v1451
        %v1453 = vmul.f32 %v1434, 1.442695
        %v1454 = vpow.pop %v1453
        %v1455 = vmul.f32 %v1435, 1.442695
        %v1456 = vpow.pop %v1455
        %v1457 = vmul.f32 %v1436, 1.442695
        %v1458 = vpow.pop %v1457
        %v1459 = vmul.f32 %v1437, 1.442695
        %v1460 = vpow.pop %v1459
        %v1461 = vmul.f32 %v1438, 1.442695
        %v1462 = vpow.pop %v1461
        %v1463 = vmul.f32 %v1439, 1.442695
        %v1464 = vpow.pop %v1463
        %v1465 = vmul.f32 %v1440, 1.442695
        %v1466 = vpow.pop %v1465
        %v1467 = vmul.f32 %v1441, 1.442695
        %v1468 = vpow.pop %v1467
        %v1469 = vmul.f32 %v1442, 1.442695
        %v1470 = vpow.pop %v1469
        %v1471 = vmul.f32 %v1443, 1.442695
        %v1472 = vpow.pop %v1471
        %v1473 = vmul.f32 %v1444, 1.442695
        %v1474 = vpow.pop %v1473
        %v1475 = vmul.f32 %v1445, 1.442695
        %v1476 = vpow.pop %v1475
        %v1477 = vmul.f32 %v1446, 1.442695
        %v1478 = vpow.pop %v1477
        %1480 = vset.pattern.permute.xlu0 0
        %1481 = vperm.xlu0 %1480, %v1415
        %v1482 = vpop.permute.xlu0 %1481
        %1485 = vset.pattern.permute.xlu0 0
        %1486 = vperm.xlu0 %1485, %v1416
        %v1487 = vpop.permute.xlu0 %1486
        %1490 = vset.pattern.permute.xlu0 0
        %1491 = vperm.xlu0 %1490, %v1417
        %v1492 = vpop.permute.xlu0 %1491
        %1495 = vset.pattern.permute.xlu0 0
        %1496 = vperm.xlu0 %1495, %v1418
        %v1497 = vpop.permute.xlu0 %1496
        %1500 = vset.pattern.permute.xlu0 0
        %1501 = vperm.xlu0 %1500, %v1419
        %v1502 = vpop.permute.xlu0 %1501
        %1505 = vset.pattern.permute.xlu0 0
        %1506 = vperm.xlu0 %1505, %v1420
        %v1507 = vpop.permute.xlu0 %1506
        %1510 = vset.pattern.permute.xlu0 0
        %1511 = vperm.xlu0 %1510, %v1421
        %v1512 = vpop.permute.xlu0 %1511
        %1515 = vset.pattern.permute.xlu0 0
        %1516 = vperm.xlu0 %1515, %v1422
        %v1517 = vpop.permute.xlu0 %1516
        %1520 = vset.pattern.permute.xlu0 0
        %1521 = vperm.xlu0 %1520, %v1423
        %v1522 = vpop.permute.xlu0 %1521
        %1525 = vset.pattern.permute.xlu0 0
        %1526 = vperm.xlu0 %1525, %v1424
        %v1527 = vpop.permute.xlu0 %1526
        %1530 = vset.pattern.permute.xlu0 0
        %1531 = vperm.xlu0 %1530, %v1425
        %v1532 = vpop.permute.xlu0 %1531
        %1535 = vset.pattern.permute.xlu0 0
        %1536 = vperm.xlu0 %1535, %v1426
        %v1537 = vpop.permute.xlu0 %1536
        %1540 = vset.pattern.permute.xlu0 0
        %1541 = vperm.xlu0 %1540, %v1427
        %v1542 = vpop.permute.xlu0 %1541
        %1545 = vset.pattern.permute.xlu0 0
        %1546 = vperm.xlu0 %1545, %v1428
        %v1547 = vpop.permute.xlu0 %1546
        %1550 = vset.pattern.permute.xlu0 0
        %1551 = vperm.xlu0 %1550, %v1429
        %v1552 = vpop.permute.xlu0 %1551
        %1555 = vset.pattern.permute.xlu0 0
        %1556 = vperm.xlu0 %1555, %v1430
        %v1557 = vpop.permute.xlu0 %1556
        %v1559 = vsub.f32 %v599, %v1482
        %v1560 = vsub.f32 %v600, %v1487
        %v1561 = vsub.f32 %v601, %v1492
        %v1562 = vsub.f32 %v602, %v1497
        %v1563 = vsub.f32 %v603, %v1502
        %v1564 = vsub.f32 %v604, %v1507
        %v1565 = vsub.f32 %v605, %v1512
        %v1566 = vsub.f32 %v606, %v1517
        %v1567 = vsub.f32 %v607, %v1522
        %v1568 = vsub.f32 %v608, %v1527
        %v1569 = vsub.f32 %v609, %v1532
        %v1570 = vsub.f32 %v610, %v1537
        %v1571 = vsub.f32 %v611, %v1542
        %v1572 = vsub.f32 %v612, %v1547
        %v1573 = vsub.f32 %v613, %v1552
        %v1574 = vsub.f32 %v614, %v1557
        %v1575 = vmul.f32 %v1559, 1.442695
        %v1576 = vpow.pop %v1575
        %v1577 = vmul.f32 %v1560, 1.442695
        %v1578 = vpow.pop %v1577
        %v1579 = vmul.f32 %v1561, 1.442695
        %v1580 = vpow.pop %v1579
        %v1581 = vmul.f32 %v1562, 1.442695
        %v1582 = vpow.pop %v1581
        %v1583 = vmul.f32 %v1563, 1.442695
        %v1584 = vpow.pop %v1583
        %v1585 = vmul.f32 %v1564, 1.442695
        %v1586 = vpow.pop %v1585
        %v1587 = vmul.f32 %v1565, 1.442695
        %v1588 = vpow.pop %v1587
        %v1589 = vmul.f32 %v1566, 1.442695
        %v1590 = vpow.pop %v1589
        %v1591 = vmul.f32 %v1567, 1.442695
        %v1592 = vpow.pop %v1591
        %v1593 = vmul.f32 %v1568, 1.442695
        %v1594 = vpow.pop %v1593
        %v1595 = vmul.f32 %v1569, 1.442695
        %v1596 = vpow.pop %v1595
        %v1597 = vmul.f32 %v1570, 1.442695
        %v1598 = vpow.pop %v1597
        %v1599 = vmul.f32 %v1571, 1.442695
        %v1600 = vpow.pop %v1599
        %v1601 = vmul.f32 %v1572, 1.442695
        %v1602 = vpow.pop %v1601
        %v1603 = vmul.f32 %v1573, 1.442695
        %v1604 = vpow.pop %v1603
        %v1605 = vmul.f32 %v1574, 1.442695
        %v1606 = vpow.pop %v1605
        %1607 = vadd.xlane.f32.xlu0 %v1576
        %v1608 = vpop.xlane.xlu0 %1607
        %1609 = vadd.xlane.f32.xlu0 %v1578
        %v1610 = vpop.xlane.xlu0 %1609
        %1611 = vadd.xlane.f32.xlu0 %v1580
        %v1612 = vpop.xlane.xlu0 %1611
        %1613 = vadd.xlane.f32.xlu0 %v1582
        %v1614 = vpop.xlane.xlu0 %1613
        %1615 = vadd.xlane.f32.xlu0 %v1584
        %v1616 = vpop.xlane.xlu0 %1615
        %1617 = vadd.xlane.f32.xlu0 %v1586
        %v1618 = vpop.xlane.xlu0 %1617
        %1619 = vadd.xlane.f32.xlu0 %v1588
        %v1620 = vpop.xlane.xlu0 %1619
        %1621 = vadd.xlane.f32.xlu0 %v1590
        %v1622 = vpop.xlane.xlu0 %1621
        %1623 = vadd.xlane.f32.xlu0 %v1592
        %v1624 = vpop.xlane.xlu0 %1623
        %1625 = vadd.xlane.f32.xlu0 %v1594
        %v1626 = vpop.xlane.xlu0 %1625
        %1627 = vadd.xlane.f32.xlu0 %v1596
        %v1628 = vpop.xlane.xlu0 %1627
        %1629 = vadd.xlane.f32.xlu0 %v1598
        %v1630 = vpop.xlane.xlu0 %1629
        %1631 = vadd.xlane.f32.xlu0 %v1600
        %v1632 = vpop.xlane.xlu0 %1631
        %1633 = vadd.xlane.f32.xlu0 %v1602
        %v1634 = vpop.xlane.xlu0 %1633
        %1635 = vadd.xlane.f32.xlu0 %v1604
        %v1636 = vpop.xlane.xlu0 %1635
        %1637 = vadd.xlane.f32.xlu0 %v1606
        %v1638 = vpop.xlane.xlu0 %1637
        %v1639 = vld [vmem:[#allocation3] sm:$0xff]
        %v1640 = vld [vmem:[#allocation3 + $0x8] sm:$0xff]
        %v1641 = vld [vmem:[#allocation3 + $0x10] sm:$0xff]
        %v1642 = vld [vmem:[#allocation3 + $0x18] sm:$0xff]
        %v1643 = vld [vmem:[#allocation3 + $0x20] sm:$0xff]
        %v1644 = vld [vmem:[#allocation3 + $0x28] sm:$0xff]
        %v1645 = vld [vmem:[#allocation3 + $0x30] sm:$0xff]
        %v1646 = vld [vmem:[#allocation3 + $0x38] sm:$0xff]
        %v1647 = vld [vmem:[#allocation3 + $0x40] sm:$0xff]
        %v1648 = vld [vmem:[#allocation3 + $0x48] sm:$0xff]
        %v1649 = vld [vmem:[#allocation3 + $0x50] sm:$0xff]
        %v1650 = vld [vmem:[#allocation3 + $0x58] sm:$0xff]
        %v1651 = vld [vmem:[#allocation3 + $0x60] sm:$0xff]
        %v1652 = vld [vmem:[#allocation3 + $0x68] sm:$0xff]
        %v1653 = vld [vmem:[#allocation3 + $0x70] sm:$0xff]
        %v1654 = vld [vmem:[#allocation3 + $0x78] sm:$0xff]
        %v1655 = vmul.f32 %v1448, %v1639
        %v1656 = vmul.f32 %v1450, %v1640
        %v1657 = vmul.f32 %v1452, %v1641
        %v1658 = vmul.f32 %v1454, %v1642
        %v1659 = vmul.f32 %v1456, %v1643
        %v1660 = vmul.f32 %v1458, %v1644
        %v1661 = vmul.f32 %v1460, %v1645
        %v1662 = vmul.f32 %v1462, %v1646
        %v1663 = vmul.f32 %v1464, %v1647
        %v1664 = vmul.f32 %v1466, %v1648
        %v1665 = vmul.f32 %v1468, %v1649
        %v1666 = vmul.f32 %v1470, %v1650
        %v1667 = vmul.f32 %v1472, %v1651
        %v1668 = vmul.f32 %v1474, %v1652
        %v1669 = vmul.f32 %v1476, %v1653
        %v1670 = vmul.f32 %v1478, %v1654
        %v1671 = vadd.f32 %v1655, %v1608
        %v1672 = vadd.f32 %v1656, %v1610
        %v1673 = vadd.f32 %v1657, %v1612
        %v1674 = vadd.f32 %v1658, %v1614
        %v1675 = vadd.f32 %v1659, %v1616
        %v1676 = vadd.f32 %v1660, %v1618
        %v1677 = vadd.f32 %v1661, %v1620
        %v1678 = vadd.f32 %v1662, %v1622
        %v1679 = vadd.f32 %v1663, %v1624
        %v1680 = vadd.f32 %v1664, %v1626
        %v1681 = vadd.f32 %v1665, %v1628
        %v1682 = vadd.f32 %v1666, %v1630
        %v1683 = vadd.f32 %v1667, %v1632
        %v1684 = vadd.f32 %v1668, %v1634
        %v1685 = vadd.f32 %v1669, %v1636
        %v1686 = vadd.f32 %v1670, %v1638
        %1687 = vst.msk [vmem:[#allocation3] sm:$0xff] %vm1350, %v1671
        %1688 = vst.msk [vmem:[#allocation3 + $0x8] sm:$0xff] %vm1350, %v1672
        %1689 = vst.msk [vmem:[#allocation3 + $0x10] sm:$0xff] %vm1350, %v1673
        %1690 = vst.msk [vmem:[#allocation3 + $0x18] sm:$0xff] %vm1350, %v1674
        %1691 = vst.msk [vmem:[#allocation3 + $0x20] sm:$0xff] %vm1350, %v1675
        %1692 = vst.msk [vmem:[#allocation3 + $0x28] sm:$0xff] %vm1350, %v1676
        %1693 = vst.msk [vmem:[#allocation3 + $0x30] sm:$0xff] %vm1350, %v1677
        %1694 = vst.msk [vmem:[#allocation3 + $0x38] sm:$0xff] %vm1350, %v1678
        %1695 = vst.msk [vmem:[#allocation3 + $0x40] sm:$0xff] %vm1350, %v1679
        %1696 = vst.msk [vmem:[#allocation3 + $0x48] sm:$0xff] %vm1350, %v1680
        %1697 = vst.msk [vmem:[#allocation3 + $0x50] sm:$0xff] %vm1350, %v1681
        %1698 = vst.msk [vmem:[#allocation3 + $0x58] sm:$0xff] %vm1350, %v1682
        %1699 = vst.msk [vmem:[#allocation3 + $0x60] sm:$0xff] %vm1350, %v1683
        %1700 = vst.msk [vmem:[#allocation3 + $0x68] sm:$0xff] %vm1350, %v1684
        %1701 = vst.msk [vmem:[#allocation3 + $0x70] sm:$0xff] %vm1350, %v1685
        %1702 = vst.msk [vmem:[#allocation3 + $0x78] sm:$0xff] %vm1350, %v1686
        %1703 = vst.msk [vmem:[#allocation2] sm:$0xff] %vm1350, %v1415
        %1704 = vst.msk [vmem:[#allocation2 + $0x8] sm:$0xff] %vm1350, %v1416
        %1705 = vst.msk [vmem:[#allocation2 + $0x10] sm:$0xff] %vm1350, %v1417
        %1706 = vst.msk [vmem:[#allocation2 + $0x18] sm:$0xff] %vm1350, %v1418
        %1707 = vst.msk [vmem:[#allocation2 + $0x20] sm:$0xff] %vm1350, %v1419
        %1708 = vst.msk [vmem:[#allocation2 + $0x28] sm:$0xff] %vm1350, %v1420
        %1709 = vst.msk [vmem:[#allocation2 + $0x30] sm:$0xff] %vm1350, %v1421
        %1710 = vst.msk [vmem:[#allocation2 + $0x38] sm:$0xff] %vm1350, %v1422
        %1711 = vst.msk [vmem:[#allocation2 + $0x40] sm:$0xff] %vm1350, %v1423
        %1712 = vst.msk [vmem:[#allocation2 + $0x48] sm:$0xff] %vm1350, %v1424
        %1713 = vst.msk [vmem:[#allocation2 + $0x50] sm:$0xff] %vm1350, %v1425
        %1714 = vst.msk [vmem:[#allocation2 + $0x58] sm:$0xff] %vm1350, %v1426
        %1715 = vst.msk [vmem:[#allocation2 + $0x60] sm:$0xff] %vm1350, %v1427
        %1716 = vst.msk [vmem:[#allocation2 + $0x68] sm:$0xff] %vm1350, %v1428
        %1717 = vst.msk [vmem:[#allocation2 + $0x70] sm:$0xff] %vm1350, %v1429
        %1718 = vst.msk [vmem:[#allocation2 + $0x78] sm:$0xff] %vm1350, %v1430
      $region52: #{tpu_custom_call.1} parent=39 // pred_fallthru
        _
      %p1719 = scmp.eq.s32.totalorder %s21, 1
      // Predicated region
      $region53: #{tpu_custom_call.1} parent=39 // pred_check
        %p1720 = pneg %p1719
      $region54: #{tpu_custom_call.1} parent=39 // pred_check_branch
        %1722 = sbr.rel (%p1720) target = $region56
      $region55: #{tpu_custom_call.1} parent=39 // pred_region
        %v1723 = vld [vmem:[%s312] sm:$0xff]
        %v1724 = vld [vmem:[%s312 + $0x8] sm:$0xff]
        %v1725 = vld [vmem:[%s312 + $0x10] sm:$0xff]
        %v1726 = vld [vmem:[%s312 + $0x18] sm:$0xff]
        %v1727 = vld [vmem:[%s312 + $0x20] sm:$0xff]
        %v1728 = vld [vmem:[%s312 + $0x28] sm:$0xff]
        %v1729 = vld [vmem:[%s312 + $0x30] sm:$0xff]
        %v1730 = vld [vmem:[%s312 + $0x38] sm:$0xff]
        %v1731 = vld [vmem:[%s312 + $0x40] sm:$0xff]
        %v1732 = vld [vmem:[%s312 + $0x48] sm:$0xff]
        %v1733 = vld [vmem:[%s312 + $0x50] sm:$0xff]
        %v1734 = vld [vmem:[%s312 + $0x58] sm:$0xff]
        %v1735 = vld [vmem:[%s312 + $0x60] sm:$0xff]
        %v1736 = vld [vmem:[%s312 + $0x68] sm:$0xff]
        %v1737 = vld [vmem:[%s312 + $0x70] sm:$0xff]
        %v1738 = vld [vmem:[%s312 + $0x78] sm:$0xff]
        %v1739 = vld [vmem:[#allocation2] sm:$0xff]
        %v1740 = vld [vmem:[#allocation2 + $0x8] sm:$0xff]
        %v1741 = vld [vmem:[#allocation2 + $0x10] sm:$0xff]
        %v1742 = vld [vmem:[#allocation2 + $0x18] sm:$0xff]
        %v1743 = vld [vmem:[#allocation2 + $0x20] sm:$0xff]
        %v1744 = vld [vmem:[#allocation2 + $0x28] sm:$0xff]
        %v1745 = vld [vmem:[#allocation2 + $0x30] sm:$0xff]
        %v1746 = vld [vmem:[#allocation2 + $0x38] sm:$0xff]
        %v1747 = vld [vmem:[#allocation2 + $0x40] sm:$0xff]
        %v1748 = vld [vmem:[#allocation2 + $0x48] sm:$0xff]
        %v1749 = vld [vmem:[#allocation2 + $0x50] sm:$0xff]
        %v1750 = vld [vmem:[#allocation2 + $0x58] sm:$0xff]
        %v1751 = vld [vmem:[#allocation2 + $0x60] sm:$0xff]
        %v1752 = vld [vmem:[#allocation2 + $0x68] sm:$0xff]
        %v1753 = vld [vmem:[#allocation2 + $0x70] sm:$0xff]
        %v1754 = vld [vmem:[#allocation2 + $0x78] sm:$0xff]
        %v1755 = vld [vmem:[#allocation3] sm:$0xff]
        %v1756 = vld [vmem:[#allocation3 + $0x8] sm:$0xff]
        %v1757 = vld [vmem:[#allocation3 + $0x10] sm:$0xff]
        %v1758 = vld [vmem:[#allocation3 + $0x18] sm:$0xff]
        %v1759 = vld [vmem:[#allocation3 + $0x20] sm:$0xff]
        %v1760 = vld [vmem:[#allocation3 + $0x28] sm:$0xff]
        %v1761 = vld [vmem:[#allocation3 + $0x30] sm:$0xff]
        %v1762 = vld [vmem:[#allocation3 + $0x38] sm:$0xff]
        %v1763 = vld [vmem:[#allocation3 + $0x40] sm:$0xff]
        %v1764 = vld [vmem:[#allocation3 + $0x48] sm:$0xff]
        %v1765 = vld [vmem:[#allocation3 + $0x50] sm:$0xff]
        %v1766 = vld [vmem:[#allocation3 + $0x58] sm:$0xff]
        %v1767 = vld [vmem:[#allocation3 + $0x60] sm:$0xff]
        %v1768 = vld [vmem:[#allocation3 + $0x68] sm:$0xff]
        %v1769 = vld [vmem:[#allocation3 + $0x70] sm:$0xff]
        %v1770 = vld [vmem:[#allocation3 + $0x78] sm:$0xff]
        %v1771 = vmax.f32 %v1755, 1e-30
        %v1772 = vmax.f32 %v1756, 1e-30
        %v1773 = vmax.f32 %v1757, 1e-30
        %v1774 = vmax.f32 %v1758, 1e-30
        %v1775 = vmax.f32 %v1759, 1e-30
        %v1776 = vmax.f32 %v1760, 1e-30
        %v1777 = vmax.f32 %v1761, 1e-30
        %v1778 = vmax.f32 %v1762, 1e-30
        %v1779 = vmax.f32 %v1763, 1e-30
        %v1780 = vmax.f32 %v1764, 1e-30
        %v1781 = vmax.f32 %v1765, 1e-30
        %v1782 = vmax.f32 %v1766, 1e-30
        %v1783 = vmax.f32 %v1767, 1e-30
        %v1784 = vmax.f32 %v1768, 1e-30
        %v1785 = vmax.f32 %v1769, 1e-30
        %v1786 = vmax.f32 %v1770, 1e-30
        %v1787 = vlog2.pop %v1771
        %v1788 = vmul.f32 %v1787, 0.6931472
        %v1789 = vlog2.pop %v1772
        %v1790 = vmul.f32 %v1789, 0.6931472
        %v1791 = vlog2.pop %v1773
        %v1792 = vmul.f32 %v1791, 0.6931472
        %v1793 = vlog2.pop %v1774
        %v1794 = vmul.f32 %v1793, 0.6931472
        %v1795 = vlog2.pop %v1775
        %v1796 = vmul.f32 %v1795, 0.6931472
        %v1797 = vlog2.pop %v1776
        %v1798 = vmul.f32 %v1797, 0.6931472
        %v1799 = vlog2.pop %v1777
        %v1800 = vmul.f32 %v1799, 0.6931472
        %v1801 = vlog2.pop %v1778
        %v1802 = vmul.f32 %v1801, 0.6931472
        %v1803 = vlog2.pop %v1779
        %v1804 = vmul.f32 %v1803, 0.6931472
        %v1805 = vlog2.pop %v1780
        %v1806 = vmul.f32 %v1805, 0.6931472
        %v1807 = vlog2.pop %v1781
        %v1808 = vmul.f32 %v1807, 0.6931472
        %v1809 = vlog2.pop %v1782
        %v1810 = vmul.f32 %v1809, 0.6931472
        %v1811 = vlog2.pop %v1783
        %v1812 = vmul.f32 %v1811, 0.6931472
        %v1813 = vlog2.pop %v1784
        %v1814 = vmul.f32 %v1813, 0.6931472
        %v1815 = vlog2.pop %v1785
        %v1816 = vmul.f32 %v1815, 0.6931472
        %v1817 = vlog2.pop %v1786
        %v1818 = vmul.f32 %v1817, 0.6931472
        %v1819 = vadd.f32 %v1739, %v1788
        %v1820 = vadd.f32 %v1740, %v1790
        %v1821 = vadd.f32 %v1741, %v1792
        %v1822 = vadd.f32 %v1742, %v1794
        %v1823 = vadd.f32 %v1743, %v1796
        %v1824 = vadd.f32 %v1744, %v1798
        %v1825 = vadd.f32 %v1745, %v1800
        %v1826 = vadd.f32 %v1746, %v1802
        %v1827 = vadd.f32 %v1747, %v1804
        %v1828 = vadd.f32 %v1748, %v1806
        %v1829 = vadd.f32 %v1749, %v1808
        %v1830 = vadd.f32 %v1750, %v1810
        %v1831 = vadd.f32 %v1751, %v1812
        %v1832 = vadd.f32 %v1752, %v1814
        %v1833 = vadd.f32 %v1753, %v1816
        %v1834 = vadd.f32 %v1754, %v1818
        %vm1835 = vcmp.lt.f32.partialorder %v1723, 1e-06
        %vm1836 = vcmp.lt.f32.partialorder %v1724, 1e-06
        %vm1837 = vcmp.lt.f32.partialorder %v1725, 1e-06
        %vm1838 = vcmp.lt.f32.partialorder %v1726, 1e-06
        %vm1839 = vcmp.lt.f32.partialorder %v1727, 1e-06
        %vm1840 = vcmp.lt.f32.partialorder %v1728, 1e-06
        %vm1841 = vcmp.lt.f32.partialorder %v1729, 1e-06
        %vm1842 = vcmp.lt.f32.partialorder %v1730, 1e-06
        %vm1843 = vcmp.lt.f32.partialorder %v1731, 1e-06
        %vm1844 = vcmp.lt.f32.partialorder %v1732, 1e-06
        %vm1845 = vcmp.lt.f32.partialorder %v1733, 1e-06
        %vm1846 = vcmp.lt.f32.partialorder %v1734, 1e-06
        %vm1847 = vcmp.lt.f32.partialorder %v1735, 1e-06
        %vm1848 = vcmp.lt.f32.partialorder %v1736, 1e-06
        %vm1849 = vcmp.lt.f32.partialorder %v1737, 1e-06
        %vm1850 = vcmp.lt.f32.partialorder %v1738, 1e-06
        %v1851 = vsel %vm1835, 1.0, %v1723
        %v1852 = vsel %vm1836, 1.0, %v1724
        %v1853 = vsel %vm1837, 1.0, %v1725
        %v1854 = vsel %vm1838, 1.0, %v1726
        %v1855 = vsel %vm1839, 1.0, %v1727
        %v1856 = vsel %vm1840, 1.0, %v1728
        %v1857 = vsel %vm1841, 1.0, %v1729
        %v1858 = vsel %vm1842, 1.0, %v1730
        %v1859 = vsel %vm1843, 1.0, %v1731
        %v1860 = vsel %vm1844, 1.0, %v1732
        %v1861 = vsel %vm1845, 1.0, %v1733
        %v1862 = vsel %vm1846, 1.0, %v1734
        %v1863 = vsel %vm1847, 1.0, %v1735
        %v1864 = vsel %vm1848, 1.0, %v1736
        %v1865 = vsel %vm1849, 1.0, %v1737
        %v1866 = vsel %vm1850, 1.0, %v1738
        %v1867 = vrcp.pop %v1851
        %v1868 = vrcp.pop %v1852
        %v1869 = vrcp.pop %v1853
        %v1870 = vrcp.pop %v1854
        %v1871 = vrcp.pop %v1855
        %v1872 = vrcp.pop %v1856
        %v1873 = vrcp.pop %v1857
        %v1874 = vrcp.pop %v1858
        %v1875 = vrcp.pop %v1859
        %v1876 = vrcp.pop %v1860
        %v1877 = vrcp.pop %v1861
        %v1878 = vrcp.pop %v1862
        %v1879 = vrcp.pop %v1863
        %v1880 = vrcp.pop %v1864
        %v1881 = vrcp.pop %v1865
        %v1882 = vrcp.pop %v1866
        %v1883 = vmul.f32 %v1851, %v1867
        %v1884 = vmul.f32 %v1852, %v1868
        %v1885 = vmul.f32 %v1853, %v1869
        %v1886 = vmul.f32 %v1854, %v1870
        %v1887 = vmul.f32 %v1855, %v1871
        %v1888 = vmul.f32 %v1856, %v1872
        %v1889 = vmul.f32 %v1857, %v1873
        %v1890 = vmul.f32 %v1858, %v1874
        %v1891 = vmul.f32 %v1859, %v1875
        %v1892 = vmul.f32 %v1860, %v1876
        %v1893 = vmul.f32 %v1861, %v1877
        %v1894 = vmul.f32 %v1862, %v1878
        %v1895 = vmul.f32 %v1863, %v1879
        %v1896 = vmul.f32 %v1864, %v1880
        %v1897 = vmul.f32 %v1865, %v1881
        %v1898 = vmul.f32 %v1866, %v1882
        %v1899 = vsub.f32 2.0, %v1883
        %v1900 = vsub.f32 2.0, %v1884
        %v1901 = vsub.f32 2.0, %v1885
        %v1902 = vsub.f32 2.0, %v1886
        %v1903 = vsub.f32 2.0, %v1887
        %v1904 = vsub.f32 2.0, %v1888
        %v1905 = vsub.f32 2.0, %v1889
        %v1906 = vsub.f32 2.0, %v1890
        %v1907 = vsub.f32 2.0, %v1891
        %v1908 = vsub.f32 2.0, %v1892
        %v1909 = vsub.f32 2.0, %v1893
        %v1910 = vsub.f32 2.0, %v1894
        %v1911 = vsub.f32 2.0, %v1895
        %v1912 = vsub.f32 2.0, %v1896
        %v1913 = vsub.f32 2.0, %v1897
        %v1914 = vsub.f32 2.0, %v1898
        %v1915 = vmul.f32 %v1867, %v1899
        %v1916 = vmul.f32 %v1868, %v1900
        %v1917 = vmul.f32 %v1869, %v1901
        %v1918 = vmul.f32 %v1870, %v1902
        %v1919 = vmul.f32 %v1871, %v1903
        %v1920 = vmul.f32 %v1872, %v1904
        %v1921 = vmul.f32 %v1873, %v1905
        %v1922 = vmul.f32 %v1874, %v1906
        %v1923 = vmul.f32 %v1875, %v1907
        %v1924 = vmul.f32 %v1876, %v1908
        %v1925 = vmul.f32 %v1877, %v1909
        %v1926 = vmul.f32 %v1878, %v1910
        %v1927 = vmul.f32 %v1879, %v1911
        %v1928 = vmul.f32 %v1880, %v1912
        %v1929 = vmul.f32 %v1881, %v1913
        %v1930 = vmul.f32 %v1882, %v1914
        %v1931 = vld [vmem:[#allocation4] sm:$0xff]
        %v1932 = vld [vmem:[#allocation4 + $0x8] sm:$0xff]
        %v1933 = vld [vmem:[#allocation4 + $0x10] sm:$0xff]
        %v1934 = vld [vmem:[#allocation4 + $0x18] sm:$0xff]
        %v1935 = vld [vmem:[#allocation4 + $0x20] sm:$0xff]
        %v1936 = vld [vmem:[#allocation4 + $0x28] sm:$0xff]
        %v1937 = vld [vmem:[#allocation4 + $0x30] sm:$0xff]
        %v1938 = vld [vmem:[#allocation4 + $0x38] sm:$0xff]
        %v1939 = vld [vmem:[#allocation4 + $0x40] sm:$0xff]
        %v1940 = vld [vmem:[#allocation4 + $0x48] sm:$0xff]
        %v1941 = vld [vmem:[#allocation4 + $0x50] sm:$0xff]
        %v1942 = vld [vmem:[#allocation4 + $0x58] sm:$0xff]
        %v1943 = vld [vmem:[#allocation4 + $0x60] sm:$0xff]
        %v1944 = vld [vmem:[#allocation4 + $0x68] sm:$0xff]
        %v1945 = vld [vmem:[#allocation4 + $0x70] sm:$0xff]
        %v1946 = vld [vmem:[#allocation4 + $0x78] sm:$0xff]
        %v1947 = vmul.f32 %v1723, %v1819
        %v1948 = vmul.f32 %v1724, %v1820
        %v1949 = vmul.f32 %v1725, %v1821
        %v1950 = vmul.f32 %v1726, %v1822
        %v1951 = vmul.f32 %v1727, %v1823
        %v1952 = vmul.f32 %v1728, %v1824
        %v1953 = vmul.f32 %v1729, %v1825
        %v1954 = vmul.f32 %v1730, %v1826
        %v1955 = vmul.f32 %v1731, %v1827
        %v1956 = vmul.f32 %v1732, %v1828
        %v1957 = vmul.f32 %v1733, %v1829
        %v1958 = vmul.f32 %v1734, %v1830
        %v1959 = vmul.f32 %v1735, %v1831
        %v1960 = vmul.f32 %v1736, %v1832
        %v1961 = vmul.f32 %v1737, %v1833
        %v1962 = vmul.f32 %v1738, %v1834
        %v1963 = vsub.f32 %v1931, %v1947
        %v1964 = vsub.f32 %v1932, %v1948
        %v1965 = vsub.f32 %v1933, %v1949
        %v1966 = vsub.f32 %v1934, %v1950
        %v1967 = vsub.f32 %v1935, %v1951
        %v1968 = vsub.f32 %v1936, %v1952
        %v1969 = vsub.f32 %v1937, %v1953
        %v1970 = vsub.f32 %v1938, %v1954
        %v1971 = vsub.f32 %v1939, %v1955
        %v1972 = vsub.f32 %v1940, %v1956
        %v1973 = vsub.f32 %v1941, %v1957
        %v1974 = vsub.f32 %v1942, %v1958
        %v1975 = vsub.f32 %v1943, %v1959
        %v1976 = vsub.f32 %v1944, %v1960
        %v1977 = vsub.f32 %v1945, %v1961
        %v1978 = vsub.f32 %v1946, %v1962
        %v1979 = vsub.f32 0.0, %v1963
        %v1980 = vsub.f32 0.0, %v1964
        %v1981 = vsub.f32 0.0, %v1965
        %v1982 = vsub.f32 0.0, %v1966
        %v1983 = vsub.f32 0.0, %v1967
        %v1984 = vsub.f32 0.0, %v1968
        %v1985 = vsub.f32 0.0, %v1969
        %v1986 = vsub.f32 0.0, %v1970
        %v1987 = vsub.f32 0.0, %v1971
        %v1988 = vsub.f32 0.0, %v1972
        %v1989 = vsub.f32 0.0, %v1973
        %v1990 = vsub.f32 0.0, %v1974
        %v1991 = vsub.f32 0.0, %v1975
        %v1992 = vsub.f32 0.0, %v1976
        %v1993 = vsub.f32 0.0, %v1977
        %v1994 = vsub.f32 0.0, %v1978
        %v1995 = vmul.f32 %v1979, %v1915
        %v1996 = vmul.f32 %v1980, %v1916
        %v1997 = vmul.f32 %v1981, %v1917
        %v1998 = vmul.f32 %v1982, %v1918
        %v1999 = vmul.f32 %v1983, %v1919
        %v2000 = vmul.f32 %v1984, %v1920
        %v2001 = vmul.f32 %v1985, %v1921
        %v2002 = vmul.f32 %v1986, %v1922
        %v2003 = vmul.f32 %v1987, %v1923
        %v2004 = vmul.f32 %v1988, %v1924
        %v2005 = vmul.f32 %v1989, %v1925
        %v2006 = vmul.f32 %v1990, %v1926
        %v2007 = vmul.f32 %v1991, %v1927
        %v2008 = vmul.f32 %v1992, %v1928
        %v2009 = vmul.f32 %v1993, %v1929
        %v2010 = vmul.f32 %v1994, %v1930
        %vm2011 = vcmask 7168
        %2012 = vst.msk [vmem:[%s318] sm:$0xff] %vm2011, %v1995
        %2013 = vst.msk [vmem:[%s318 + $0x8] sm:$0xff] %vm2011, %v1996
        %2014 = vst.msk [vmem:[%s318 + $0x10] sm:$0xff] %vm2011, %v1997
        %2015 = vst.msk [vmem:[%s318 + $0x18] sm:$0xff] %vm2011, %v1998
        %2016 = vst.msk [vmem:[%s318 + $0x20] sm:$0xff] %vm2011, %v1999
        %2017 = vst.msk [vmem:[%s318 + $0x28] sm:$0xff] %vm2011, %v2000
        %2018 = vst.msk [vmem:[%s318 + $0x30] sm:$0xff] %vm2011, %v2001
        %2019 = vst.msk [vmem:[%s318 + $0x38] sm:$0xff] %vm2011, %v2002
        %2020 = vst.msk [vmem:[%s318 + $0x40] sm:$0xff] %vm2011, %v2003
        %2021 = vst.msk [vmem:[%s318 + $0x48] sm:$0xff] %vm2011, %v2004
        %2022 = vst.msk [vmem:[%s318 + $0x50] sm:$0xff] %vm2011, %v2005
        %2023 = vst.msk [vmem:[%s318 + $0x58] sm:$0xff] %vm2011, %v2006
        %2024 = vst.msk [vmem:[%s318 + $0x60] sm:$0xff] %vm2011, %v2007
        %2025 = vst.msk [vmem:[%s318 + $0x68] sm:$0xff] %vm2011, %v2008
        %2026 = vst.msk [vmem:[%s318 + $0x70] sm:$0xff] %vm2011, %v2009
        %2027 = vst.msk [vmem:[%s318 + $0x78] sm:$0xff] %vm2011, %v2010
      $region56: #{tpu_custom_call.1} parent=39 // pred_fallthru
        _
      %s2028 = smul.u32 16, %s20
      %p2029 = scmp.lt.s32.totalorder %s2028, 31
      %s2030 = scalar_select %p2029, %s2028, 31
      %s2031 = smul.addr %s2030, 8
      %s2032 = scalar_lea.vmem %s5, %s2031
      // Predicated region
      $region57: #{tpu_custom_call.1} parent=39 // pred_check
        %p2033 = pneg %p176
      $region58: #{tpu_custom_call.1} parent=39 // pred_check_branch
        %2035 = sbr.rel (%p2033) target = $region60
      $region59: #{tpu_custom_call.1} parent=39 // pred_region
        %s2036 = smul.u32 16, %s20
      $region60: #{tpu_custom_call.1} parent=39 // pred_fallthru
        _
    $region40: #{tpu_custom_call.1} parent=5 // pred_fallthru
      _
    %p2037 = scmp.le.s32.totalorder 2, %s11
    // Predicated region
    $region61: #{tpu_custom_call.1} parent=5 // pred_check
      %p2038 = pneg %p2037
    $region62: #{tpu_custom_call.1} parent=5 // pred_check_branch
      %2040 = sbr.rel (%p2038) target = $region64
    $region63: #{tpu_custom_call.1} parent=5 // pred_region
      %s2041 = ssub.s32 %s11, 2
      // Predicated region
      $region65: #{tpu_custom_call.1} parent=63 // pred_check
        %p2042 = pneg %p182
      $region66: #{tpu_custom_call.1} parent=63 // pred_check_branch
        %2044 = sbr.rel (%p2042) target = $region68
      $region67: #{tpu_custom_call.1} parent=63 // pred_region
        %s2045 = smul.u32 16, %s22
        %p2046 = scmp.lt.s32.totalorder %s2045, 31
        %s2047 = scalar_select %p2046, %s2045, 31
        %s2048 = smul.addr %s2047, 8
        %s2049 = scalar_lea.vmem %s5, %s2048
      $region68: #{tpu_custom_call.1} parent=63 // pred_fallthru
        _
    $region64: #{tpu_custom_call.1} parent=5 // pred_fallthru
      _
  $region6: #{tpu_custom_call.1} parent=0 // loop_footer
    %s15 = sadd.s32 1, %s11
  $region7: #{tpu_custom_call.1} parent=0 // loop_footer_branch
    %10 = sbr.rel target = $region3
  $region8: #{tpu_custom_call.1} parent=0 // loop_exit
    _

</llo_original>
